<compile_context>
chip_gen: v6e
topology: v6e:2x2x1
jax: 0.10.0
libtpu: 0.0.40
codegen_flags: <defaults>
</compile_context>

<pallas_src>
import math

import jax
import jax.numpy as jnp
from jax import lax
from jax.experimental import pallas as pl
from jax.experimental.pallas import tpu as pltpu

D_MODEL = 32
N_HEADS = 4
DIM_FF = 64
EPS = 1e-5  # PyTorch LayerNorm default


def _layer_norm(x, gamma, beta):
    mu = jnp.mean(x, axis=-1, keepdims=True)
    var = jnp.mean((x - mu) ** 2, axis=-1, keepdims=True)
    return (x - mu) * lax.rsqrt(var + EPS) * gamma + beta


def init_params(key, d_model=D_MODEL, dim_ff=DIM_FF):
    ks = jax.random.split(key, 6)
    scale = 0.02
    return {
        "g1": jnp.ones((1, d_model), jnp.float32),
        "be1": jnp.zeros((1, d_model), jnp.float32),
        "wq": scale * jax.random.normal(ks[0], (d_model, d_model), jnp.float32),
        "bq": jnp.zeros((1, d_model), jnp.float32),
        "wk": scale * jax.random.normal(ks[1], (d_model, d_model), jnp.float32),
        "bk": jnp.zeros((1, d_model), jnp.float32),
        "wv": scale * jax.random.normal(ks[2], (d_model, d_model), jnp.float32),
        "bv": jnp.zeros((1, d_model), jnp.float32),
        "wo": scale * jax.random.normal(ks[3], (d_model, d_model), jnp.float32),
        "bo": jnp.zeros((1, d_model), jnp.float32),
        "g2": jnp.ones((1, d_model), jnp.float32),
        "be2": jnp.zeros((1, d_model), jnp.float32),
        "w1": scale * jax.random.normal(ks[4], (d_model, dim_ff), jnp.float32),
        "bb1": jnp.zeros((1, dim_ff), jnp.float32),
        "w2": scale * jax.random.normal(ks[5], (dim_ff, d_model), jnp.float32),
        "bb2": jnp.zeros((1, d_model), jnp.float32),
    }


def continuous_residual_layer(x, mask_pad_src, params):
    """Returns {'x': F_enc(x, mask_pad_src)}.  x: [B, S, D] f32, mask: [B, S] bool."""
    B, S, D = x.shape
    H = N_HEADS
    dh = D // H
    F = params["w1"].shape[1]
    vec_w = 128
    assert D % H == 0 and 3 * D <= vec_w and F <= vec_w and S <= vec_w

    # Process all B rows in one grid step (B·S is tiny; per-step overhead would
    # dominate).  Structure keeps a grid axis so a larger-B / larger-S problem
    # could tile Bt < B across it (and across v7x's 2 TensorCores).
    Bt = B
    grid = (B // Bt,)

    scale = 1.0 / math.sqrt(dh)

    # --- fused weight slab: [ wq*scale | wk | wv | wo | w1 ]  -> (D, 4D + F) ---
    w_in = jnp.concatenate(
        [params["wq"] * scale, params["wk"], params["wv"], params["wo"], params["w1"]],
        axis=1,
    )
    w2 = params["w2"]  # (F, D)

    # --- all row-vector params + per-batch additive key bias in one slab -----
    def row(v):
        v = v.reshape(-1)
        return jnp.pad(v, (0, vec_w - v.shape[0]))

    b_qkv = jnp.concatenate(
        [params["bq"].reshape(-1) * scale, params["bk"].reshape(-1),
         params["bv"].reshape(-1)])
    param_rows = jnp.stack([
        row(params["g1"]), row(params["be1"]), row(b_qkv), row(params["bo"]),
        row(params["g2"]), row(params["be2"]), row(params["bb1"]), row(params["bb2"]),
    ])  # (8, 128)

    # Precomputed additive key-padding bias, one row per batch element
    # (lane-aligned per-batch [:S] slice in-kernel; no mask DMA, no compare).
    bias_rows = jnp.where(mask_pad_src, jnp.float32(-1e9), jnp.float32(0.0))  # (B, S)
    bias_rows = jnp.pad(bias_rows, ((0, 0), (0, vec_w - S)))                  # (B, 128)

    n_rows_raw = 8 + B
    n_rows = ((n_rows_raw + 7) // 8) * 8
    vecs = jnp.concatenate([param_rows, bias_rows], axis=0)
    vecs = jnp.pad(vecs, ((0, n_rows - n_rows_raw), (0, 0)))                  # (n_rows, 128)

    x2 = x.reshape(B * S, D)

    def kernel(x_ref, w_in_ref, w2_ref, vec_ref, o_ref):
        xk = x_ref[...]                                   # (Bt*S, D) f32

        # Row-vector params (hoisted once; JAX won't CSE broadcasts in loops).
        g1 = vec_ref[0:1, :D]
        be1 = vec_ref[1:2, :D]
        bqkv = vec_ref[2:3, :3 * D]
        bo = vec_ref[3:4, :D]
        g2 = vec_ref[4:5, :D]
        be2 = vec_ref[5:6, :D]
        bb1 = vec_ref[6:7, :F]
        bb2 = vec_ref[7:8, :D]

        w_all = w_in_ref[...]                             # (D, 4D+F)
        w_qkv = w_all[:, :3 * D]
        wo = w_all[:, 3 * D:4 * D]                        # (D, D)
        w1 = w_all[:, 4 * D:4 * D + F]

        # ---- pre-LN multi-head self-attention ----
        z = _layer_norm(xk, g1, be1)
        # One fused matmul for Q|K|V (1/sqrt(dh) already folded into Q cols).
        qkv = jnp.dot(z, w_qkv, preferred_element_type=jnp.float32) + bqkv

        attn_rows = []
        for b in range(Bt):                               # static unrolled
            rows = slice(b * S, (b + 1) * S)
            bias = vec_ref[8 + b:9 + b, :S]               # (1, S) additive key bias
            # Transpose this batch's K block ONCE; per-head K^T is then an
            # aligned 8-sublane slice (no per-head transpose / lane rotate).
            kT = qkv[rows, D:2 * D].T                     # (D, S)
            out_b = jnp.zeros((S, D), jnp.float32)
            for h in range(H):                            # static unrolled
                qh = qkv[rows, h * dh:(h + 1) * dh]                   # (S, dh)
                kTh = kT[h * dh:(h + 1) * dh, :]                      # (dh, S)
                vh = qkv[rows, 2 * D + h * dh:2 * D + (h + 1) * dh]   # (S, dh)
                s = jnp.dot(qh, kTh, preferred_element_type=jnp.float32) + bias
                s = s - jnp.max(s, axis=-1, keepdims=True)
                p = jnp.exp(s)
                p = p / jnp.sum(p, axis=-1, keepdims=True)            # exact softmax
                # Accumulate through the matching sublane row block of Wo
                # (no lane-wise head concat).
                pv = jnp.dot(p, vh, preferred_element_type=jnp.float32)
                out_b = out_b + jnp.dot(pv, wo[h * dh:(h + 1) * dh, :],
                                        preferred_element_type=jnp.float32)
            attn_rows.append(out_b)                       # (S, D), in vregs
        attn = jnp.concatenate(attn_rows, axis=0)         # (Bt*S, D) sublane concat

        h1 = xk + attn + bo

        # ---- pre-LN feed-forward ----
        z2 = _layer_norm(h1, g2, be2)
        ff = jnp.maximum(
            jnp.dot(z2, w1, preferred_element_type=jnp.float32) + bb1, 0.0)
        ff = jnp.dot(ff, w2_ref[...], preferred_element_type=jnp.float32) + bb2

        o_ref[...] = (h1 + ff).astype(o_ref.dtype)

    out = pl.pallas_call(
        kernel,
        out_shape=jax.ShapeDtypeStruct((B * S, D), x.dtype),
        grid=grid,
        in_specs=[
            pl.BlockSpec((Bt * S, D), lambda i: (i, 0)),     # x (flattened rows)
            pl.BlockSpec((D, 4 * D + F), lambda i: (0, 0)),  # fused weight slab
            pl.BlockSpec((F, D), lambda i: (0, 0)),          # w2
            pl.BlockSpec((n_rows, vec_w), lambda i: (0, 0)),  # packed vectors + bias
        ],
        out_specs=pl.BlockSpec((Bt * S, D), lambda i: (i, 0)),
        compiler_params=pltpu.CompilerParams(dimension_semantics=("parallel",)),
    )(x2, w_in, w2, vecs)

    return {"x": out.reshape(B, S, D)}


def _reference(x, mask_pad_src, p):
    """Pure-JAX reference of the same F_enc for a correctness check."""
    def ln(v, g, b):
        mu = v.mean(-1, keepdims=True)
        var = ((v - mu) ** 2).mean(-1, keepdims=True)
        return (v - mu) / jnp.sqrt(var + EPS) * g + b

    B, S, D = x.shape
    dh = D // N_HEADS
    # NOTE: fully-padded query rows would degrade to a uniform softmax rather
    # than PyTorch's -inf/NaN behavior; intentional divergence, documented.
    bias = jnp.where(mask_pad_src, -1e9, 0.0)[:, None, None, :]  # [B,1,1,S]
    z = ln(x, p["g1"], p["be1"])
    q = z @ p["wq"] + p["bq"]
    k = z @ p["wk"] + p["bk"]
    v = z @ p["wv"] + p["bv"]
    qh = q.reshape(B, S, N_HEADS, dh).transpose(0, 2, 1, 3)
    kh = k.reshape(B, S, N_HEADS, dh).transpose(0, 2, 1, 3)
    vh = v.reshape(B, S, N_HEADS, dh).transpose(0, 2, 1, 3)
    s = jnp.einsum("bhqd,bhkd->bhqk", qh, kh) / math.sqrt(dh) + bias
    pattn = jax.nn.softmax(s, axis=-1)
    o = jnp.einsum("bhqk,bhkd->bhqd", pattn, vh).transpose(0, 2, 1, 3).reshape(B, S, D)
    h1 = x + o @ p["wo"] + p["bo"]
    z2 = ln(h1, p["g2"], p["be2"])
    ff = jnp.maximum(z2 @ p["w1"] + p["bb1"], 0.0) @ p["w2"] + p["bb2"]
    return h1 + ff


if __name__ == "__main__":
    key = jax.random.PRNGKey(0)
    k_x, k_p = jax.random.split(key)

    B, S = 2, 8
    x = jax.random.normal(k_x, (B, S, D_MODEL), jnp.float32)
    # True == padding position (PyTorch key_padding_mask convention)
    mask_pad_src = jnp.array(
        [[False] * S,
         [False] * (S - 3) + [True] * 3],
        dtype=jnp.bool_)

    params = init_params(k_p)

    out = continuous_residual_layer(x, mask_pad_src, params)
    jax.block_until_ready(out["x"])

    ref = _reference(x, mask_pad_src, params)
    assert out["x"].shape == (B, S, D_MODEL)
    assert jnp.allclose(out["x"], ref, atol=1e-3, rtol=1e-3), "mismatch vs reference"

    print("KERNEL_OK")
</pallas_src>

<mosaic_0001>
module attributes {stable_mosaic.version = 11 : i64} {
  func.func @kernel(%arg0: i32, %arg1: memref<16x32xf32, #tpu.memory_space<vmem>>, %arg2: memref<32x192xf32, #tpu.memory_space<vmem>>, %arg3: memref<64x32xf32, #tpu.memory_space<vmem>>, %arg4: memref<16x128xf32, #tpu.memory_space<vmem>>, %arg5: memref<16x32xf32, #tpu.memory_space<vmem>>) attributes {dimension_semantics = [#tpu.dimension_semantics<parallel>], iteration_bounds = array<i64: 1>, scalar_prefetch = 0 : i64, scratch_operands = 0 : i64, tpu.core_type = #tpu.core_type<tc>, window_params = [{transform_indices = @transform_0, window_bounds = array<i64: 16, 32>}, {pipeline_mode = #tpu.pipeline_mode<synchronous>, transform_indices = @transform_1, window_bounds = array<i64: 32, 192>}, {pipeline_mode = #tpu.pipeline_mode<synchronous>, transform_indices = @transform_2, window_bounds = array<i64: 64, 32>}, {pipeline_mode = #tpu.pipeline_mode<synchronous>, transform_indices = @transform_3, window_bounds = array<i64: 16, 128>}, {transform_indices = @transform_4, window_bounds = array<i64: 16, 32>}]} {
    %c0 = arith.constant 0 : index
    %c0_0 = arith.constant 0 : index
    %0 = vector.load %arg1[%c0, %c0_0] : memref<16x32xf32, #tpu.memory_space<vmem>>, vector<16x32xf32>
    %c0_1 = arith.constant 0 : index
    %c0_2 = arith.constant 0 : index
    %1 = vector.load %arg4[%c0_1, %c0_2] : memref<16x128xf32, #tpu.memory_space<vmem>>, vector<1x32xf32>
    %c1 = arith.constant 1 : index
    %c0_3 = arith.constant 0 : index
    %2 = vector.load %arg4[%c1, %c0_3] : memref<16x128xf32, #tpu.memory_space<vmem>>, vector<1x32xf32>
    %c2 = arith.constant 2 : index
    %c0_4 = arith.constant 0 : index
    %3 = vector.load %arg4[%c2, %c0_4] : memref<16x128xf32, #tpu.memory_space<vmem>>, vector<1x96xf32>
    %c3 = arith.constant 3 : index
    %c0_5 = arith.constant 0 : index
    %4 = vector.load %arg4[%c3, %c0_5] : memref<16x128xf32, #tpu.memory_space<vmem>>, vector<1x32xf32>
    %c4 = arith.constant 4 : index
    %c0_6 = arith.constant 0 : index
    %5 = vector.load %arg4[%c4, %c0_6] : memref<16x128xf32, #tpu.memory_space<vmem>>, vector<1x32xf32>
    %c5 = arith.constant 5 : index
    %c0_7 = arith.constant 0 : index
    %6 = vector.load %arg4[%c5, %c0_7] : memref<16x128xf32, #tpu.memory_space<vmem>>, vector<1x32xf32>
    %c6 = arith.constant 6 : index
    %c0_8 = arith.constant 0 : index
    %7 = vector.load %arg4[%c6, %c0_8] : memref<16x128xf32, #tpu.memory_space<vmem>>, vector<1x64xf32>
    %c7 = arith.constant 7 : index
    %c0_9 = arith.constant 0 : index
    %8 = vector.load %arg4[%c7, %c0_9] : memref<16x128xf32, #tpu.memory_space<vmem>>, vector<1x32xf32>
    %c0_10 = arith.constant 0 : index
    %c0_11 = arith.constant 0 : index
    %9 = vector.load %arg2[%c0_10, %c0_11] : memref<32x192xf32, #tpu.memory_space<vmem>>, vector<32x192xf32>
    %10 = vector.extract_strided_slice %9 {offsets = [0, 0], sizes = [32, 96], strides = [1, 1]} : vector<32x192xf32> to vector<32x96xf32>
    %11 = vector.extract_strided_slice %9 {offsets = [0, 96], sizes = [32, 32], strides = [1, 1]} : vector<32x192xf32> to vector<32x32xf32>
    %12 = vector.extract_strided_slice %9 {offsets = [0, 128], sizes = [32, 64], strides = [1, 1]} : vector<32x192xf32> to vector<32x64xf32>
    %cst = arith.constant dense<0.000000e+00> : vector<16xf32>
    %13 = vector.multi_reduction <add>, %0, %cst [1] : vector<16x32xf32> to vector<16xf32>
    %14 = vector.shape_cast %13 : vector<16xf32> to vector<16x1xf32>
    %cst_12 = arith.constant 3.200000e+01 : f32
    %15 = vector.broadcast %cst_12 : f32 to vector<16x1xf32>
    %16 = arith.divf %14, %15 : vector<16x1xf32>
    %17 = vector.broadcast %16 : vector<16x1xf32> to vector<16x32xf32>
    %18 = arith.subf %0, %17 : vector<16x32xf32>
    %19 = arith.mulf %18, %18 : vector<16x32xf32>
    %cst_13 = arith.constant dense<0.000000e+00> : vector<16xf32>
    %20 = vector.multi_reduction <add>, %19, %cst_13 [1] : vector<16x32xf32> to vector<16xf32>
    %21 = vector.shape_cast %20 : vector<16xf32> to vector<16x1xf32>
    %cst_14 = arith.constant 3.200000e+01 : f32
    %22 = vector.broadcast %cst_14 : f32 to vector<16x1xf32>
    %23 = arith.divf %21, %22 : vector<16x1xf32>
    %24 = vector.broadcast %16 : vector<16x1xf32> to vector<16x32xf32>
    %25 = arith.subf %0, %24 : vector<16x32xf32>
    %cst_15 = arith.constant 9.99999974E-6 : f32
    %26 = vector.broadcast %cst_15 : f32 to vector<16x1xf32>
    %27 = arith.addf %23, %26 : vector<16x1xf32>
    %28 = math.rsqrt %27 : vector<16x1xf32>
    %29 = vector.broadcast %28 : vector<16x1xf32> to vector<16x32xf32>
    %30 = arith.mulf %25, %29 : vector<16x32xf32>
    %31 = vector.broadcast %1 : vector<1x32xf32> to vector<16x32xf32>
    %32 = arith.mulf %30, %31 : vector<16x32xf32>
    %33 = vector.broadcast %2 : vector<1x32xf32> to vector<16x32xf32>
    %34 = arith.addf %32, %33 : vector<16x32xf32>
    %cst_16 = arith.constant dense<0.000000e+00> : vector<16x96xf32>
    %35 = tpu.matmul %34, %10, %cst_16 {dimension_numbers = #tpu.dot_dimension_numbers<[1], [0], [0], [1], [0, 0, 1, 1], [], []>} : vector<16x32xf32>, vector<32x96xf32>, vector<16x96xf32> -> vector<16x96xf32>
    %36 = vector.broadcast %3 : vector<1x96xf32> to vector<16x96xf32>
    %37 = arith.addf %35, %36 : vector<16x96xf32>
    %c8 = arith.constant 8 : index
    %c0_17 = arith.constant 0 : index
    %38 = vector.load %arg4[%c8, %c0_17] : memref<16x128xf32, #tpu.memory_space<vmem>>, vector<1x8xf32>
    %39 = vector.extract_strided_slice %37 {offsets = [0, 32], sizes = [8, 32], strides = [1, 1]} : vector<16x96xf32> to vector<8x32xf32>
    %40 = tpu.transpose %39, [1, 0] : vector<8x32xf32> -> vector<32x8xf32>
    %cst_18 = arith.constant 0.000000e+00 : f32
    %41 = vector.broadcast %cst_18 : f32 to vector<8x32xf32>
    %42 = vector.extract_strided_slice %37 {offsets = [0, 0], sizes = [8, 8], strides = [1, 1]} : vector<16x96xf32> to vector<8x8xf32>
    %43 = vector.extract_strided_slice %40 {offsets = [0, 0], sizes = [8, 8], strides = [1, 1]} : vector<32x8xf32> to vector<8x8xf32>
    %44 = vector.extract_strided_slice %37 {offsets = [0, 64], sizes = [8, 8], strides = [1, 1]} : vector<16x96xf32> to vector<8x8xf32>
    %cst_19 = arith.constant dense<0.000000e+00> : vector<8x8xf32>
    %45 = tpu.matmul %42, %43, %cst_19 {dimension_numbers = #tpu.dot_dimension_numbers<[1], [0], [0], [1], [0, 0, 1, 1], [], []>} : vector<8x8xf32>, vector<8x8xf32>, vector<8x8xf32> -> vector<8x8xf32>
    %46 = vector.broadcast %38 : vector<1x8xf32> to vector<8x8xf32>
    %47 = arith.addf %45, %46 : vector<8x8xf32>
    %cst_20 = arith.constant dense<0xFF800000> : vector<8xf32>
    %48 = vector.multi_reduction <maximumf>, %47, %cst_20 [1] : vector<8x8xf32> to vector<8xf32>
    %49 = vector.shape_cast %48 : vector<8xf32> to vector<8x1xf32>
    %50 = vector.broadcast %49 : vector<8x1xf32> to vector<8x8xf32>
    %51 = arith.subf %47, %50 : vector<8x8xf32>
    %52 = math.exp %51 : vector<8x8xf32>
    %cst_21 = arith.constant dense<0.000000e+00> : vector<8xf32>
    %53 = vector.multi_reduction <add>, %52, %cst_21 [1] : vector<8x8xf32> to vector<8xf32>
    %54 = vector.shape_cast %53 : vector<8xf32> to vector<8x1xf32>
    %55 = vector.broadcast %54 : vector<8x1xf32> to vector<8x8xf32>
    %56 = arith.divf %52, %55 : vector<8x8xf32>
    %cst_22 = arith.constant dense<0.000000e+00> : vector<8x8xf32>
    %57 = tpu.matmul %56, %44, %cst_22 {dimension_numbers = #tpu.dot_dimension_numbers<[1], [0], [0], [1], [0, 0, 1, 1], [], []>} : vector<8x8xf32>, vector<8x8xf32>, vector<8x8xf32> -> vector<8x8xf32>
    %58 = vector.extract_strided_slice %11 {offsets = [0, 0], sizes = [8, 32], strides = [1, 1]} : vector<32x32xf32> to vector<8x32xf32>
    %cst_23 = arith.constant dense<0.000000e+00> : vector<8x32xf32>
    %59 = tpu.matmul %57, %58, %cst_23 {dimension_numbers = #tpu.dot_dimension_numbers<[1], [0], [0], [1], [0, 0, 1, 1], [], []>} : vector<8x8xf32>, vector<8x32xf32>, vector<8x32xf32> -> vector<8x32xf32>
    %60 = arith.addf %41, %59 : vector<8x32xf32>
    %61 = vector.extract_strided_slice %37 {offsets = [0, 8], sizes = [8, 8], strides = [1, 1]} : vector<16x96xf32> to vector<8x8xf32>
    %62 = vector.extract_strided_slice %40 {offsets = [8, 0], sizes = [8, 8], strides = [1, 1]} : vector<32x8xf32> to vector<8x8xf32>
    %63 = vector.extract_strided_slice %37 {offsets = [0, 72], sizes = [8, 8], strides = [1, 1]} : vector<16x96xf32> to vector<8x8xf32>
    %cst_24 = arith.constant dense<0.000000e+00> : vector<8x8xf32>
    %64 = tpu.matmul %61, %62, %cst_24 {dimension_numbers = #tpu.dot_dimension_numbers<[1], [0], [0], [1], [0, 0, 1, 1], [], []>} : vector<8x8xf32>, vector<8x8xf32>, vector<8x8xf32> -> vector<8x8xf32>
    %65 = vector.broadcast %38 : vector<1x8xf32> to vector<8x8xf32>
    %66 = arith.addf %64, %65 : vector<8x8xf32>
    %cst_25 = arith.constant dense<0xFF800000> : vector<8xf32>
    %67 = vector.multi_reduction <maximumf>, %66, %cst_25 [1] : vector<8x8xf32> to vector<8xf32>
    %68 = vector.shape_cast %67 : vector<8xf32> to vector<8x1xf32>
    %69 = vector.broadcast %68 : vector<8x1xf32> to vector<8x8xf32>
    %70 = arith.subf %66, %69 : vector<8x8xf32>
    %71 = math.exp %70 : vector<8x8xf32>
    %cst_26 = arith.constant dense<0.000000e+00> : vector<8xf32>
    %72 = vector.multi_reduction <add>, %71, %cst_26 [1] : vector<8x8xf32> to vector<8xf32>
    %73 = vector.shape_cast %72 : vector<8xf32> to vector<8x1xf32>
    %74 = vector.broadcast %73 : vector<8x1xf32> to vector<8x8xf32>
    %75 = arith.divf %71, %74 : vector<8x8xf32>
    %cst_27 = arith.constant dense<0.000000e+00> : vector<8x8xf32>
    %76 = tpu.matmul %75, %63, %cst_27 {dimension_numbers = #tpu.dot_dimension_numbers<[1], [0], [0], [1], [0, 0, 1, 1], [], []>} : vector<8x8xf32>, vector<8x8xf32>, vector<8x8xf32> -> vector<8x8xf32>
    %77 = vector.extract_strided_slice %11 {offsets = [8, 0], sizes = [8, 32], strides = [1, 1]} : vector<32x32xf32> to vector<8x32xf32>
    %cst_28 = arith.constant dense<0.000000e+00> : vector<8x32xf32>
    %78 = tpu.matmul %76, %77, %cst_28 {dimension_numbers = #tpu.dot_dimension_numbers<[1], [0], [0], [1], [0, 0, 1, 1], [], []>} : vector<8x8xf32>, vector<8x32xf32>, vector<8x32xf32> -> vector<8x32xf32>
    %79 = arith.addf %60, %78 : vector<8x32xf32>
    %80 = vector.extract_strided_slice %37 {offsets = [0, 16], sizes = [8, 8], strides = [1, 1]} : vector<16x96xf32> to vector<8x8xf32>
    %81 = vector.extract_strided_slice %40 {offsets = [16, 0], sizes = [8, 8], strides = [1, 1]} : vector<32x8xf32> to vector<8x8xf32>
    %82 = vector.extract_strided_slice %37 {offsets = [0, 80], sizes = [8, 8], strides = [1, 1]} : vector<16x96xf32> to vector<8x8xf32>
    %cst_29 = arith.constant dense<0.000000e+00> : vector<8x8xf32>
    %83 = tpu.matmul %80, %81, %cst_29 {dimension_numbers = #tpu.dot_dimension_numbers<[1], [0], [0], [1], [0, 0, 1, 1], [], []>} : vector<8x8xf32>, vector<8x8xf32>, vector<8x8xf32> -> vector<8x8xf32>
    %84 = vector.broadcast %38 : vector<1x8xf32> to vector<8x8xf32>
    %85 = arith.addf %83, %84 : vector<8x8xf32>
    %cst_30 = arith.constant dense<0xFF800000> : vector<8xf32>
    %86 = vector.multi_reduction <maximumf>, %85, %cst_30 [1] : vector<8x8xf32> to vector<8xf32>
    %87 = vector.shape_cast %86 : vector<8xf32> to vector<8x1xf32>
    %88 = vector.broadcast %87 : vector<8x1xf32> to vector<8x8xf32>
    %89 = arith.subf %85, %88 : vector<8x8xf32>
    %90 = math.exp %89 : vector<8x8xf32>
    %cst_31 = arith.constant dense<0.000000e+00> : vector<8xf32>
    %91 = vector.multi_reduction <add>, %90, %cst_31 [1] : vector<8x8xf32> to vector<8xf32>
    %92 = vector.shape_cast %91 : vector<8xf32> to vector<8x1xf32>
    %93 = vector.broadcast %92 : vector<8x1xf32> to vector<8x8xf32>
    %94 = arith.divf %90, %93 : vector<8x8xf32>
    %cst_32 = arith.constant dense<0.000000e+00> : vector<8x8xf32>
    %95 = tpu.matmul %94, %82, %cst_32 {dimension_numbers = #tpu.dot_dimension_numbers<[1], [0], [0], [1], [0, 0, 1, 1], [], []>} : vector<8x8xf32>, vector<8x8xf32>, vector<8x8xf32> -> vector<8x8xf32>
    %96 = vector.extract_strided_slice %11 {offsets = [16, 0], sizes = [8, 32], strides = [1, 1]} : vector<32x32xf32> to vector<8x32xf32>
    %cst_33 = arith.constant dense<0.000000e+00> : vector<8x32xf32>
    %97 = tpu.matmul %95, %96, %cst_33 {dimension_numbers = #tpu.dot_dimension_numbers<[1], [0], [0], [1], [0, 0, 1, 1], [], []>} : vector<8x8xf32>, vector<8x32xf32>, vector<8x32xf32> -> vector<8x32xf32>
    %98 = arith.addf %79, %97 : vector<8x32xf32>
    %99 = vector.extract_strided_slice %37 {offsets = [0, 24], sizes = [8, 8], strides = [1, 1]} : vector<16x96xf32> to vector<8x8xf32>
    %100 = vector.extract_strided_slice %40 {offsets = [24, 0], sizes = [8, 8], strides = [1, 1]} : vector<32x8xf32> to vector<8x8xf32>
    %101 = vector.extract_strided_slice %37 {offsets = [0, 88], sizes = [8, 8], strides = [1, 1]} : vector<16x96xf32> to vector<8x8xf32>
    %cst_34 = arith.constant dense<0.000000e+00> : vector<8x8xf32>
    %102 = tpu.matmul %99, %100, %cst_34 {dimension_numbers = #tpu.dot_dimension_numbers<[1], [0], [0], [1], [0, 0, 1, 1], [], []>} : vector<8x8xf32>, vector<8x8xf32>, vector<8x8xf32> -> vector<8x8xf32>
    %103 = vector.broadcast %38 : vector<1x8xf32> to vector<8x8xf32>
    %104 = arith.addf %102, %103 : vector<8x8xf32>
    %cst_35 = arith.constant dense<0xFF800000> : vector<8xf32>
    %105 = vector.multi_reduction <maximumf>, %104, %cst_35 [1] : vector<8x8xf32> to vector<8xf32>
    %106 = vector.shape_cast %105 : vector<8xf32> to vector<8x1xf32>
    %107 = vector.broadcast %106 : vector<8x1xf32> to vector<8x8xf32>
    %108 = arith.subf %104, %107 : vector<8x8xf32>
    %109 = math.exp %108 : vector<8x8xf32>
    %cst_36 = arith.constant dense<0.000000e+00> : vector<8xf32>
    %110 = vector.multi_reduction <add>, %109, %cst_36 [1] : vector<8x8xf32> to vector<8xf32>
    %111 = vector.shape_cast %110 : vector<8xf32> to vector<8x1xf32>
    %112 = vector.broadcast %111 : vector<8x1xf32> to vector<8x8xf32>
    %113 = arith.divf %109, %112 : vector<8x8xf32>
    %cst_37 = arith.constant dense<0.000000e+00> : vector<8x8xf32>
    %114 = tpu.matmul %113, %101, %cst_37 {dimension_numbers = #tpu.dot_dimension_numbers<[1], [0], [0], [1], [0, 0, 1, 1], [], []>} : vector<8x8xf32>, vector<8x8xf32>, vector<8x8xf32> -> vector<8x8xf32>
    %115 = vector.extract_strided_slice %11 {offsets = [24, 0], sizes = [8, 32], strides = [1, 1]} : vector<32x32xf32> to vector<8x32xf32>
    %cst_38 = arith.constant dense<0.000000e+00> : vector<8x32xf32>
    %116 = tpu.matmul %114, %115, %cst_38 {dimension_numbers = #tpu.dot_dimension_numbers<[1], [0], [0], [1], [0, 0, 1, 1], [], []>} : vector<8x8xf32>, vector<8x32xf32>, vector<8x32xf32> -> vector<8x32xf32>
    %117 = arith.addf %98, %116 : vector<8x32xf32>
    %c9 = arith.constant 9 : index
    %c0_39 = arith.constant 0 : index
    %118 = vector.load %arg4[%c9, %c0_39] : memref<16x128xf32, #tpu.memory_space<vmem>>, vector<1x8xf32>
    %119 = vector.extract_strided_slice %37 {offsets = [8, 32], sizes = [8, 32], strides = [1, 1]} : vector<16x96xf32> to vector<8x32xf32>
    %120 = tpu.transpose %119, [1, 0] : vector<8x32xf32> -> vector<32x8xf32>
    %cst_40 = arith.constant 0.000000e+00 : f32
    %121 = vector.broadcast %cst_40 : f32 to vector<8x32xf32>
    %122 = vector.extract_strided_slice %37 {offsets = [8, 0], sizes = [8, 8], strides = [1, 1]} : vector<16x96xf32> to vector<8x8xf32>
    %123 = vector.extract_strided_slice %120 {offsets = [0, 0], sizes = [8, 8], strides = [1, 1]} : vector<32x8xf32> to vector<8x8xf32>
    %124 = vector.extract_strided_slice %37 {offsets = [8, 64], sizes = [8, 8], strides = [1, 1]} : vector<16x96xf32> to vector<8x8xf32>
    %cst_41 = arith.constant dense<0.000000e+00> : vector<8x8xf32>
    %125 = tpu.matmul %122, %123, %cst_41 {dimension_numbers = #tpu.dot_dimension_numbers<[1], [0], [0], [1], [0, 0, 1, 1], [], []>} : vector<8x8xf32>, vector<8x8xf32>, vector<8x8xf32> -> vector<8x8xf32>
    %126 = vector.broadcast %118 : vector<1x8xf32> to vector<8x8xf32>
    %127 = arith.addf %125, %126 : vector<8x8xf32>
    %cst_42 = arith.constant dense<0xFF800000> : vector<8xf32>
    %128 = vector.multi_reduction <maximumf>, %127, %cst_42 [1] : vector<8x8xf32> to vector<8xf32>
    %129 = vector.shape_cast %128 : vector<8xf32> to vector<8x1xf32>
    %130 = vector.broadcast %129 : vector<8x1xf32> to vector<8x8xf32>
    %131 = arith.subf %127, %130 : vector<8x8xf32>
    %132 = math.exp %131 : vector<8x8xf32>
    %cst_43 = arith.constant dense<0.000000e+00> : vector<8xf32>
    %133 = vector.multi_reduction <add>, %132, %cst_43 [1] : vector<8x8xf32> to vector<8xf32>
    %134 = vector.shape_cast %133 : vector<8xf32> to vector<8x1xf32>
    %135 = vector.broadcast %134 : vector<8x1xf32> to vector<8x8xf32>
    %136 = arith.divf %132, %135 : vector<8x8xf32>
    %cst_44 = arith.constant dense<0.000000e+00> : vector<8x8xf32>
    %137 = tpu.matmul %136, %124, %cst_44 {dimension_numbers = #tpu.dot_dimension_numbers<[1], [0], [0], [1], [0, 0, 1, 1], [], []>} : vector<8x8xf32>, vector<8x8xf32>, vector<8x8xf32> -> vector<8x8xf32>
    %138 = vector.extract_strided_slice %11 {offsets = [0, 0], sizes = [8, 32], strides = [1, 1]} : vector<32x32xf32> to vector<8x32xf32>
    %cst_45 = arith.constant dense<0.000000e+00> : vector<8x32xf32>
    %139 = tpu.matmul %137, %138, %cst_45 {dimension_numbers = #tpu.dot_dimension_numbers<[1], [0], [0], [1], [0, 0, 1, 1], [], []>} : vector<8x8xf32>, vector<8x32xf32>, vector<8x32xf32> -> vector<8x32xf32>
    %140 = arith.addf %121, %139 : vector<8x32xf32>
    %141 = vector.extract_strided_slice %37 {offsets = [8, 8], sizes = [8, 8], strides = [1, 1]} : vector<16x96xf32> to vector<8x8xf32>
    %142 = vector.extract_strided_slice %120 {offsets = [8, 0], sizes = [8, 8], strides = [1, 1]} : vector<32x8xf32> to vector<8x8xf32>
    %143 = vector.extract_strided_slice %37 {offsets = [8, 72], sizes = [8, 8], strides = [1, 1]} : vector<16x96xf32> to vector<8x8xf32>
    %cst_46 = arith.constant dense<0.000000e+00> : vector<8x8xf32>
    %144 = tpu.matmul %141, %142, %cst_46 {dimension_numbers = #tpu.dot_dimension_numbers<[1], [0], [0], [1], [0, 0, 1, 1], [], []>} : vector<8x8xf32>, vector<8x8xf32>, vector<8x8xf32> -> vector<8x8xf32>
    %145 = vector.broadcast %118 : vector<1x8xf32> to vector<8x8xf32>
    %146 = arith.addf %144, %145 : vector<8x8xf32>
    %cst_47 = arith.constant dense<0xFF800000> : vector<8xf32>
    %147 = vector.multi_reduction <maximumf>, %146, %cst_47 [1] : vector<8x8xf32> to vector<8xf32>
    %148 = vector.shape_cast %147 : vector<8xf32> to vector<8x1xf32>
    %149 = vector.broadcast %148 : vector<8x1xf32> to vector<8x8xf32>
    %150 = arith.subf %146, %149 : vector<8x8xf32>
    %151 = math.exp %150 : vector<8x8xf32>
    %cst_48 = arith.constant dense<0.000000e+00> : vector<8xf32>
    %152 = vector.multi_reduction <add>, %151, %cst_48 [1] : vector<8x8xf32> to vector<8xf32>
    %153 = vector.shape_cast %152 : vector<8xf32> to vector<8x1xf32>
    %154 = vector.broadcast %153 : vector<8x1xf32> to vector<8x8xf32>
    %155 = arith.divf %151, %154 : vector<8x8xf32>
    %cst_49 = arith.constant dense<0.000000e+00> : vector<8x8xf32>
    %156 = tpu.matmul %155, %143, %cst_49 {dimension_numbers = #tpu.dot_dimension_numbers<[1], [0], [0], [1], [0, 0, 1, 1], [], []>} : vector<8x8xf32>, vector<8x8xf32>, vector<8x8xf32> -> vector<8x8xf32>
    %157 = vector.extract_strided_slice %11 {offsets = [8, 0], sizes = [8, 32], strides = [1, 1]} : vector<32x32xf32> to vector<8x32xf32>
    %cst_50 = arith.constant dense<0.000000e+00> : vector<8x32xf32>
    %158 = tpu.matmul %156, %157, %cst_50 {dimension_numbers = #tpu.dot_dimension_numbers<[1], [0], [0], [1], [0, 0, 1, 1], [], []>} : vector<8x8xf32>, vector<8x32xf32>, vector<8x32xf32> -> vector<8x32xf32>
    %159 = arith.addf %140, %158 : vector<8x32xf32>
    %160 = vector.extract_strided_slice %37 {offsets = [8, 16], sizes = [8, 8], strides = [1, 1]} : vector<16x96xf32> to vector<8x8xf32>
    %161 = vector.extract_strided_slice %120 {offsets = [16, 0], sizes = [8, 8], strides = [1, 1]} : vector<32x8xf32> to vector<8x8xf32>
    %162 = vector.extract_strided_slice %37 {offsets = [8, 80], sizes = [8, 8], strides = [1, 1]} : vector<16x96xf32> to vector<8x8xf32>
    %cst_51 = arith.constant dense<0.000000e+00> : vector<8x8xf32>
    %163 = tpu.matmul %160, %161, %cst_51 {dimension_numbers = #tpu.dot_dimension_numbers<[1], [0], [0], [1], [0, 0, 1, 1], [], []>} : vector<8x8xf32>, vector<8x8xf32>, vector<8x8xf32> -> vector<8x8xf32>
    %164 = vector.broadcast %118 : vector<1x8xf32> to vector<8x8xf32>
    %165 = arith.addf %163, %164 : vector<8x8xf32>
    %cst_52 = arith.constant dense<0xFF800000> : vector<8xf32>
    %166 = vector.multi_reduction <maximumf>, %165, %cst_52 [1] : vector<8x8xf32> to vector<8xf32>
    %167 = vector.shape_cast %166 : vector<8xf32> to vector<8x1xf32>
    %168 = vector.broadcast %167 : vector<8x1xf32> to vector<8x8xf32>
    %169 = arith.subf %165, %168 : vector<8x8xf32>
    %170 = math.exp %169 : vector<8x8xf32>
    %cst_53 = arith.constant dense<0.000000e+00> : vector<8xf32>
    %171 = vector.multi_reduction <add>, %170, %cst_53 [1] : vector<8x8xf32> to vector<8xf32>
    %172 = vector.shape_cast %171 : vector<8xf32> to vector<8x1xf32>
    %173 = vector.broadcast %172 : vector<8x1xf32> to vector<8x8xf32>
    %174 = arith.divf %170, %173 : vector<8x8xf32>
    %cst_54 = arith.constant dense<0.000000e+00> : vector<8x8xf32>
    %175 = tpu.matmul %174, %162, %cst_54 {dimension_numbers = #tpu.dot_dimension_numbers<[1], [0], [0], [1], [0, 0, 1, 1], [], []>} : vector<8x8xf32>, vector<8x8xf32>, vector<8x8xf32> -> vector<8x8xf32>
    %176 = vector.extract_strided_slice %11 {offsets = [16, 0], sizes = [8, 32], strides = [1, 1]} : vector<32x32xf32> to vector<8x32xf32>
    %cst_55 = arith.constant dense<0.000000e+00> : vector<8x32xf32>
    %177 = tpu.matmul %175, %176, %cst_55 {dimension_numbers = #tpu.dot_dimension_numbers<[1], [0], [0], [1], [0, 0, 1, 1], [], []>} : vector<8x8xf32>, vector<8x32xf32>, vector<8x32xf32> -> vector<8x32xf32>
    %178 = arith.addf %159, %177 : vector<8x32xf32>
    %179 = vector.extract_strided_slice %37 {offsets = [8, 24], sizes = [8, 8], strides = [1, 1]} : vector<16x96xf32> to vector<8x8xf32>
    %180 = vector.extract_strided_slice %120 {offsets = [24, 0], sizes = [8, 8], strides = [1, 1]} : vector<32x8xf32> to vector<8x8xf32>
    %181 = vector.extract_strided_slice %37 {offsets = [8, 88], sizes = [8, 8], strides = [1, 1]} : vector<16x96xf32> to vector<8x8xf32>
    %cst_56 = arith.constant dense<0.000000e+00> : vector<8x8xf32>
    %182 = tpu.matmul %179, %180, %cst_56 {dimension_numbers = #tpu.dot_dimension_numbers<[1], [0], [0], [1], [0, 0, 1, 1], [], []>} : vector<8x8xf32>, vector<8x8xf32>, vector<8x8xf32> -> vector<8x8xf32>
    %183 = vector.broadcast %118 : vector<1x8xf32> to vector<8x8xf32>
    %184 = arith.addf %182, %183 : vector<8x8xf32>
    %cst_57 = arith.constant dense<0xFF800000> : vector<8xf32>
    %185 = vector.multi_reduction <maximumf>, %184, %cst_57 [1] : vector<8x8xf32> to vector<8xf32>
    %186 = vector.shape_cast %185 : vector<8xf32> to vector<8x1xf32>
    %187 = vector.broadcast %186 : vector<8x1xf32> to vector<8x8xf32>
    %188 = arith.subf %184, %187 : vector<8x8xf32>
    %189 = math.exp %188 : vector<8x8xf32>
    %cst_58 = arith.constant dense<0.000000e+00> : vector<8xf32>
    %190 = vector.multi_reduction <add>, %189, %cst_58 [1] : vector<8x8xf32> to vector<8xf32>
    %191 = vector.shape_cast %190 : vector<8xf32> to vector<8x1xf32>
    %192 = vector.broadcast %191 : vector<8x1xf32> to vector<8x8xf32>
    %193 = arith.divf %189, %192 : vector<8x8xf32>
    %cst_59 = arith.constant dense<0.000000e+00> : vector<8x8xf32>
    %194 = tpu.matmul %193, %181, %cst_59 {dimension_numbers = #tpu.dot_dimension_numbers<[1], [0], [0], [1], [0, 0, 1, 1], [], []>} : vector<8x8xf32>, vector<8x8xf32>, vector<8x8xf32> -> vector<8x8xf32>
    %195 = vector.extract_strided_slice %11 {offsets = [24, 0], sizes = [8, 32], strides = [1, 1]} : vector<32x32xf32> to vector<8x32xf32>
    %cst_60 = arith.constant dense<0.000000e+00> : vector<8x32xf32>
    %196 = tpu.matmul %194, %195, %cst_60 {dimension_numbers = #tpu.dot_dimension_numbers<[1], [0], [0], [1], [0, 0, 1, 1], [], []>} : vector<8x8xf32>, vector<8x32xf32>, vector<8x32xf32> -> vector<8x32xf32>
    %197 = arith.addf %178, %196 : vector<8x32xf32>
    %198 = tpu.concatenate %117, %197 in 0 : vector<8x32xf32>, vector<8x32xf32> -> vector<16x32xf32>
    %199 = arith.addf %0, %198 : vector<16x32xf32>
    %200 = vector.broadcast %4 : vector<1x32xf32> to vector<16x32xf32>
    %201 = arith.addf %199, %200 : vector<16x32xf32>
    %cst_61 = arith.constant dense<0.000000e+00> : vector<16xf32>
    %202 = vector.multi_reduction <add>, %201, %cst_61 [1] : vector<16x32xf32> to vector<16xf32>
    %203 = vector.shape_cast %202 : vector<16xf32> to vector<16x1xf32>
    %cst_62 = arith.constant 3.200000e+01 : f32
    %204 = vector.broadcast %cst_62 : f32 to vector<16x1xf32>
    %205 = arith.divf %203, %204 : vector<16x1xf32>
    %206 = vector.broadcast %205 : vector<16x1xf32> to vector<16x32xf32>
    %207 = arith.subf %201, %206 : vector<16x32xf32>
    %208 = arith.mulf %207, %207 : vector<16x32xf32>
    %cst_63 = arith.constant dense<0.000000e+00> : vector<16xf32>
    %209 = vector.multi_reduction <add>, %208, %cst_63 [1] : vector<16x32xf32> to vector<16xf32>
    %210 = vector.shape_cast %209 : vector<16xf32> to vector<16x1xf32>
    %cst_64 = arith.constant 3.200000e+01 : f32
    %211 = vector.broadcast %cst_64 : f32 to vector<16x1xf32>
    %212 = arith.divf %210, %211 : vector<16x1xf32>
    %213 = vector.broadcast %205 : vector<16x1xf32> to vector<16x32xf32>
    %214 = arith.subf %201, %213 : vector<16x32xf32>
    %cst_65 = arith.constant 9.99999974E-6 : f32
    %215 = vector.broadcast %cst_65 : f32 to vector<16x1xf32>
    %216 = arith.addf %212, %215 : vector<16x1xf32>
    %217 = math.rsqrt %216 : vector<16x1xf32>
    %218 = vector.broadcast %217 : vector<16x1xf32> to vector<16x32xf32>
    %219 = arith.mulf %214, %218 : vector<16x32xf32>
    %220 = vector.broadcast %5 : vector<1x32xf32> to vector<16x32xf32>
    %221 = arith.mulf %219, %220 : vector<16x32xf32>
    %222 = vector.broadcast %6 : vector<1x32xf32> to vector<16x32xf32>
    %223 = arith.addf %221, %222 : vector<16x32xf32>
    %cst_66 = arith.constant dense<0.000000e+00> : vector<16x64xf32>
    %224 = tpu.matmul %223, %12, %cst_66 {dimension_numbers = #tpu.dot_dimension_numbers<[1], [0], [0], [1], [0, 0, 1, 1], [], []>} : vector<16x32xf32>, vector<32x64xf32>, vector<16x64xf32> -> vector<16x64xf32>
    %225 = vector.broadcast %7 : vector<1x64xf32> to vector<16x64xf32>
    %226 = arith.addf %224, %225 : vector<16x64xf32>
    %cst_67 = arith.constant 0.000000e+00 : f32
    %227 = vector.broadcast %cst_67 : f32 to vector<16x64xf32>
    %228 = arith.maximumf %226, %227 : vector<16x64xf32>
    %c0_68 = arith.constant 0 : index
    %c0_69 = arith.constant 0 : index
    %229 = vector.load %arg3[%c0_68, %c0_69] : memref<64x32xf32, #tpu.memory_space<vmem>>, vector<64x32xf32>
    %cst_70 = arith.constant dense<0.000000e+00> : vector<16x32xf32>
    %230 = tpu.matmul %228, %229, %cst_70 {dimension_numbers = #tpu.dot_dimension_numbers<[1], [0], [0], [1], [0, 0, 1, 1], [], []>} : vector<16x64xf32>, vector<64x32xf32>, vector<16x32xf32> -> vector<16x32xf32>
    %231 = vector.broadcast %8 : vector<1x32xf32> to vector<16x32xf32>
    %232 = arith.addf %230, %231 : vector<16x32xf32>
    %233 = arith.addf %201, %232 : vector<16x32xf32>
    %c0_71 = arith.constant 0 : index
    %c0_72 = arith.constant 0 : index
    %234 = vector.load %arg5[%c0_71, %c0_72] : memref<16x32xf32, #tpu.memory_space<vmem>>, vector<16x32xf32>
    tpu.vector_store %arg5[%c0_71, %c0_72], %233 {strides = array<i32>} : memref<16x32xf32, #tpu.memory_space<vmem>>, vector<16x32xf32>,
    return
  }
  func.func @transform_0(%arg0: i32) -> (i32, i32) {
    %c0_i32 = arith.constant 0 : i32
    %c0_i32_0 = arith.constant 0 : i32
    return %arg0, %c0_i32 : i32, i32
  }
  func.func @transform_1(%arg0: i32) -> (i32, i32) {
    %c0_i32 = arith.constant 0 : i32
    %c0_i32_0 = arith.constant 0 : i32
    %c0_i32_1 = arith.constant 0 : i32
    return %c0_i32, %c0_i32_0 : i32, i32
  }
  func.func @transform_2(%arg0: i32) -> (i32, i32) {
    %c0_i32 = arith.constant 0 : i32
    %c0_i32_0 = arith.constant 0 : i32
    %c0_i32_1 = arith.constant 0 : i32
    return %c0_i32, %c0_i32_0 : i32, i32
  }
  func.func @transform_3(%arg0: i32) -> (i32, i32) {
    %c0_i32 = arith.constant 0 : i32
    %c0_i32_0 = arith.constant 0 : i32
    %c0_i32_1 = arith.constant 0 : i32
    return %c0_i32, %c0_i32_0 : i32, i32
  }
  func.func @transform_4(%arg0: i32) -> (i32, i32) {
    %c0_i32 = arith.constant 0 : i32
    %c0_i32_0 = arith.constant 0 : i32
    return %arg0, %c0_i32 : i32, i32
  }
}

</mosaic_0001>

<llo_original>
// kernel: tpu_custom_call.1
$region0: #{tpu_custom_call.1}
  #allocation0 [shape = 'u32[]', space=smem, size = 0x4, offset = 0x4, fixed_abs, tag = 'smem constant byte address 0x4 - core index']
  #allocation1 [shape = 'u32[144,128]{1,0:T(1,128)}', space=vmem, size = 0x12000, scoped, tag = 'internal scratch']
  %s0 = inlined_call_operand.vmem [shape: f32[16,32], index: 0, kind: input, shape index: {}]
  %s1 = inlined_call_operand.vmem [shape: f32[32,192], index: 1, kind: input, shape index: {}]
  %s2 = inlined_call_operand.vmem [shape: f32[64,32], index: 2, kind: input, shape index: {}]
  %s3 = inlined_call_operand.vmem [shape: f32[16,128], index: 3, kind: input, shape index: {}]
  %s4 = inlined_call_operand.hbm [shape: f32[16,32], index: 4, kind: output, shape index: {}]
  %s5 = sld [smem:[#allocation0]]
  $region26: #{tpu_custom_call.1} parent=0
    _
  %s7 = ssub.s32 1, %s5
  %s8 = scalar_select 0, %s7, %s5
  $region1: #{tpu_custom_call.1} parent=0
    #allocation2 [shape = 'u8[8192]{0}', space=vmem, size = 0x2000, scoped, tag = 'output window, operand 0, single buffered']
    #allocation3 [shape = 's32[1]{0}', space=sflag, size = 0x4, scoped, tag = 'scoped memory for tpu_custom_call.1']
    %9 = vsyncpa [#allocation3], 0
    // Predicated region
    $region2: #{tpu_custom_call.1} parent=1 // pred_check
      _
    $region3: #{tpu_custom_call.1} parent=1 // pred_check_branch
      %11 = sbr.rel (0) target = $region5
    $region4: #{tpu_custom_call.1} parent=1 // pred_region
      _
    $region5: #{tpu_custom_call.1} parent=1 // pred_fallthru
      _
    // Predicated region
    $region6: #{tpu_custom_call.1} parent=1 // pred_check
      _
    $region7: #{tpu_custom_call.1} parent=1 // pred_check_branch
      %13 = sbr.rel (0) target = $region9
    $region8: #{tpu_custom_call.1} parent=1 // pred_region
      _
    $region9: #{tpu_custom_call.1} parent=1 // pred_fallthru
      _
    // Predicated region
    $region10: #{tpu_custom_call.1} parent=1 // pred_check
      _
    $region11: #{tpu_custom_call.1} parent=1 // pred_check_branch
      %15 = sbr.rel (0) target = $region13
    $region12: #{tpu_custom_call.1} parent=1 // pred_region
      _
    $region13: #{tpu_custom_call.1} parent=1 // pred_fallthru
      _
    // Predicated region
    $region14: #{tpu_custom_call.1} parent=1 // pred_check
      _
    $region15: #{tpu_custom_call.1} parent=1 // pred_check_branch
      %17 = sbr.rel (0) target = $region17
    $region16: #{tpu_custom_call.1} parent=1 // pred_region
      _
    $region17: #{tpu_custom_call.1} parent=1 // pred_fallthru
      _
    %v18 = vld [vmem:[%s0] sm:$0xff]
    %v19 = vld [vmem:[%s0 + $0x8] sm:$0xff]
    %v20 = vld [vmem:[%s3] sm:$0x1]
    %v21 = vld [vmem:[%s3 + $0x1] sm:$0x1]
    %v22 = vld [vmem:[%s3 + $0x2] sm:$0x1]
    %v23 = vld [vmem:[%s3 + $0x3] sm:$0x1]
    %v24 = vld [vmem:[%s3 + $0x4] sm:$0x1]
    %v25 = vld [vmem:[%s3 + $0x5] sm:$0x1]
    %v26 = vld [vmem:[%s3 + $0x6] sm:$0x1]
    %v27 = vld [vmem:[%s3 + $0x7] sm:$0x1]
    %v28 = vld [vmem:[%s1] sm:$0xff]
    %v29 = vld [vmem:[%s1 + $0x8] sm:$0xff]
    %v30 = vld [vmem:[%s1 + $0x10] sm:$0xff]
    %v31 = vld [vmem:[%s1 + $0x18] sm:$0xff]
    %v32 = vld [vmem:[%s1 + $0x20] sm:$0xff]
    %v33 = vld [vmem:[%s1 + $0x28] sm:$0xff]
    %v34 = vld [vmem:[%s1 + $0x30] sm:$0xff]
    %v35 = vld [vmem:[%s1 + $0x38] sm:$0xff]
    %vm36 = vcmask 261120
    %v37 = vsel %vm36, %v18, 0.0
    %38 = vadd.xlane.f32.xlu0 %v37
    %v39 = vpop.xlane.xlu0 %38
    %v40 = vsel %vm36, %v19, 0.0
    %41 = vadd.xlane.f32.xlu0 %v40
    %v42 = vpop.xlane.xlu0 %41
    %v43 = vrcp.pop 32.0
    %v44 = vmul.f32 %v39, %v43
    %v45 = vmul.f32 %v42, %v43
    %v46 = vsub.f32 %v18, %v44
    %v47 = vsub.f32 %v19, %v45
    %v48 = vmul.f32 %v46, %v46
    %v49 = vmul.f32 %v47, %v47
    %v50 = vsel %vm36, %v48, 0.0
    %51 = vadd.xlane.f32.xlu0 %v50
    %v52 = vpop.xlane.xlu0 %51
    %v53 = vsel %vm36, %v49, 0.0
    %54 = vadd.xlane.f32.xlu0 %v53
    %v55 = vpop.xlane.xlu0 %54
    %v56 = vmul.f32 %v52, %v43
    %v57 = vmul.f32 %v55, %v43
    %v58 = vadd.f32 %v56, 1e-05
    %v59 = vadd.f32 %v57, 1e-05
    %v60 = vrsqrt.pop %v58
    %v61 = vrsqrt.pop %v59
    %v62 = vmul.f32 %v46, %v60
    %v63 = vmul.f32 %v47, %v61
    %v64 = vlaneseq
    %v65 = vshrl.u32 %v64, 7
    %v66 = vsub.s32 0, %v65
    %v67 = vrot.slane %v20, %v66
    %v68 = vmul.f32 %v62, %v67
    %v69 = vmul.f32 %v63, %v67
    %v70 = vlaneseq
    %v71 = vshrl.u32 %v70, 7
    %v72 = vsub.s32 0, %v71
    %v73 = vrot.slane %v21, %v72
    %v74 = vadd.f32 %v68, %v73
    %v75 = vadd.f32 %v69, %v73
    %v76 = vlaneseq
    %v77 = vshrl.u32 %v76, 7
    %v78 = vsub.s32 0, %v77
    %v79 = vrot.slane %v22, %v78
    %v81 = vsel %vm36, %v74, 0
    %v84 = vsel %vm36, %v75, 0
    %86 = vmatprep.subr.mxu0 0.0
    %87 = vmatpush1.msra.mxu0 0.0
    %88 = vmatprep.subr.mxu0 0.0
    %89 = vmatpush1.msra.mxu0 0.0
    %90 = vmatprep.subr.mxu0 0.0
    %91 = vmatpush1.msra.mxu0 0.0
    %92 = vmatprep.subr.mxu0 0.0
    %93 = vmatpush1.msra.mxu0 0.0
    %94 = vmatprep.subr.mxu0 0.0
    %95 = vmatpush1.msra.mxu0 0.0
    %96 = vmatprep.subr.mxu0 0.0
    %97 = vmatpush1.msra.mxu0 0.0
    %98 = vmatprep.subr.mxu0 0.0
    %99 = vmatpush1.msra.mxu0 0.0
    %100 = vmatprep.subr.mxu0 0.0
    %101 = vmatpush1.msra.mxu0 0.0
    %102 = vmatprep.subr.mxu0 0.0
    %103 = vmatpush1.msra.mxu0 0.0
    %104 = vmatprep.subr.mxu0 0.0
    %105 = vmatpush1.msra.mxu0 0.0
    %106 = vmatprep.subr.mxu0 0.0
    %107 = vmatpush1.msra.mxu0 0.0
    %108 = vmatprep.subr.mxu0 0.0
    %109 = vmatpush1.msra.mxu0 0.0
    %110 = vmatprep.subr.mxu0 0.0
    %111 = vmatpush1.msra.mxu0 %v34
    %112 = vmatprep.subr.mxu0 0.0
    %113 = vmatpush1.msra.mxu0 %v32
    %114 = vmatprep.subr.mxu0 0.0
    %115 = vmatpush1.msra.mxu0 %v30
    %116 = vmatprep.subr.mxu0 0.0
    %117 = vmatpush1.msra.mxu0 %v28
    %118 = vmatprep.subr.mxu0 0.0
    %119 = vmatpush2.msra.mxu0 0.0
    %120 = vmatprep.subr.mxu0 0.0
    %121 = vmatpush2.msra.mxu0 0.0
    %122 = vmatprep.subr.mxu0 0.0
    %123 = vmatpush2.msra.mxu0 0.0
    %124 = vmatprep.subr.mxu0 0.0
    %125 = vmatpush2.msra.mxu0 0.0
    %126 = vmatprep.subr.mxu0 0.0
    %127 = vmatpush2.msra.mxu0 0.0
    %128 = vmatprep.subr.mxu0 0.0
    %129 = vmatpush2.msra.mxu0 0.0
    %130 = vmatprep.subr.mxu0 0.0
    %131 = vmatpush2.msra.mxu0 0.0
    %132 = vmatprep.subr.mxu0 0.0
    %133 = vmatpush2.msra.mxu0 0.0
    %134 = vmatprep.subr.mxu0 0.0
    %135 = vmatpush2.msra.mxu0 0.0
    %136 = vmatprep.subr.mxu0 0.0
    %137 = vmatpush2.msra.mxu0 0.0
    %138 = vmatprep.subr.mxu0 0.0
    %139 = vmatpush2.msra.mxu0 0.0
    %140 = vmatprep.subr.mxu0 0.0
    %141 = vmatpush2.msra.mxu0 0.0
    %142 = vmatprep.subr.mxu0 0.0
    %143 = vmatpush2.msra.mxu0 0.0
    %144 = vmatprep.subr.mxu0 0.0
    %145 = vmatpush2.msra.mxu0 0.0
    %146 = vmatprep.subr.mxu0 0.0
    %147 = vmatpush2.msra.mxu0 0.0
    %148 = vmatprep.subr.mxu0 0.0
    %149 = vmatpush2.msra.mxu0 0.0
    %150 = vmatprep.mubr.f32.mxu0 0.0
    %151 = vmatmul.mubr.f32.gmra.mxu0 %v81
    %v152 = vpop.f32.mrf.mxu0
    %v153 = vadd.f32 %v79, %v152
    %v154 = vpop.f32.mrf.mxu0
    %155 = vmatprep.mubr.f32.mxu0 0.0
    %156 = vmatmul.mubr.f32.gmra.mxu0 %v84
    %v157 = vpop.f32.mrf.mxu0
    %v158 = vadd.f32 %v79, %v157
    %v159 = vpop.f32.mrf.mxu0
    %160 = vdwg.mxu0
    %v161 = vld [vmem:[%s3 + $0x8] sm:$0x1]
    %v162 = vlaneseq
    %v163 = vshrl.u32 %v162, 7
    %v164 = vsub.s32 0, %v163
    %v165 = vrot.slane %v161, %v164
    %167 = vrot.lane.b32.xlu0 %v153, 96
    %v168 = vpop.permute.xlu0 %167
    %vm169 = vcmask 64512
    %v170 = vsel %vm169, %v153, 0
    %v172 = vsel %vm169, %v168, 0
    %174 = vmatprep.subr.mxu0 0.0
    %175 = vmatpush1.xpose.msra.mxu0 0.0
    %176 = vmatprep.subr.mxu0 0.0
    %177 = vmatpush1.xpose.msra.mxu0 0.0
    %178 = vmatprep.subr.mxu0 0.0
    %179 = vmatpush1.xpose.msra.mxu0 0.0
    %180 = vmatprep.subr.mxu0 0.0
    %181 = vmatpush1.xpose.msra.mxu0 0.0
    %182 = vmatprep.subr.mxu0 0.0
    %183 = vmatpush1.xpose.msra.mxu0 0.0
    %184 = vmatprep.subr.mxu0 0.0
    %185 = vmatpush1.xpose.msra.mxu0 0.0
    %186 = vmatprep.subr.mxu0 0.0
    %187 = vmatpush1.xpose.msra.mxu0 0.0
    %188 = vmatprep.subr.mxu0 0.0
    %189 = vmatpush1.xpose.msra.mxu0 0.0
    %190 = vmatprep.subr.mxu0 0.0
    %191 = vmatpush1.xpose.msra.mxu0 0.0
    %192 = vmatprep.subr.mxu0 0.0
    %193 = vmatpush1.xpose.msra.mxu0 0.0
    %194 = vmatprep.subr.mxu0 0.0
    %195 = vmatpush1.xpose.msra.mxu0 0.0
    %196 = vmatprep.subr.mxu0 0.0
    %197 = vmatpush1.xpose.msra.mxu0 0.0
    %198 = vmatprep.subr.mxu0 0.0
    %199 = vmatpush1.xpose.msra.mxu0 0.0
    %200 = vmatprep.subr.mxu0 0.0
    %201 = vmatpush1.xpose.msra.mxu0 0.0
    %202 = vmatprep.subr.mxu0 0.0
    %203 = vmatpush1.xpose.msra.mxu0 0.0
    %204 = vmatprep.subr.mxu0 0.0
    %205 = vmatpush1.xpose.msra.mxu0 %v172
    %206 = vmatprep.subr.mxu0 0.0
    %207 = vmatpush2.xpose.msra.mxu0 0.0
    %208 = vmatprep.subr.mxu0 0.0
    %209 = vmatpush2.xpose.msra.mxu0 0.0
    %210 = vmatprep.subr.mxu0 0.0
    %211 = vmatpush2.xpose.msra.mxu0 0.0
    %212 = vmatprep.subr.mxu0 0.0
    %213 = vmatpush2.xpose.msra.mxu0 0.0
    %214 = vmatprep.subr.mxu0 0.0
    %215 = vmatpush2.xpose.msra.mxu0 0.0
    %216 = vmatprep.subr.mxu0 0.0
    %217 = vmatpush2.xpose.msra.mxu0 0.0
    %218 = vmatprep.subr.mxu0 0.0
    %219 = vmatpush2.xpose.msra.mxu0 0.0
    %220 = vmatprep.subr.mxu0 0.0
    %221 = vmatpush2.xpose.msra.mxu0 0.0
    %222 = vmatprep.subr.mxu0 0.0
    %223 = vmatpush2.xpose.msra.mxu0 0.0
    %224 = vmatprep.subr.mxu0 0.0
    %225 = vmatpush2.xpose.msra.mxu0 0.0
    %226 = vmatprep.subr.mxu0 0.0
    %227 = vmatpush2.xpose.msra.mxu0 0.0
    %228 = vmatprep.subr.mxu0 0.0
    %229 = vmatpush2.xpose.msra.mxu0 0.0
    %230 = vmatprep.subr.mxu0 0.0
    %231 = vmatpush2.xpose.msra.mxu0 0.0
    %232 = vmatprep.subr.mxu0 0.0
    %233 = vmatpush2.xpose.msra.mxu0 0.0
    %234 = vmatprep.subr.mxu0 0.0
    %235 = vmatpush2.xpose.msra.mxu0 0.0
    %236 = vmatprep.subr.mxu0 0.0
    %237 = vmatpush2.xpose.msra.mxu0 0.0
    %238 = vmatprep.mubr.f32.mxu0 0.0
    %239 = vmatmul.mubr.f32.gmra.mxu0 %v170
    %v240 = vpop.f32.mrf.mxu0
    %v241 = vadd.f32 %v165, %v240
    %v242 = vpop.f32.mrf.mxu0
    %243 = vdwg.mxu0
    %v244 = vsel %vm169, %v241, -inf
    %245 = vmax.xlane.f32.xlu0 %v244
    %v246 = vpop.xlane.xlu0 %245
    %v247 = vsub.f32 %v241, %v246
    %v248 = vmul.f32 %v247, 1.442695
    %v249 = vpow.pop %v248
    %v250 = vsel %vm169, %v249, 0.0
    %251 = vadd.xlane.f32.xlu0 %v250
    %v252 = vpop.xlane.xlu0 %251
    %v253 = vrcp.pop %v252
    %v254 = vmul.f32 %v249, %v253
    %255 = vrot.lane.b32.xlu0 %v153, 64
    %v256 = vpop.permute.xlu0 %255
    %v259 = vsel %vm169, %v254, 0
    %261 = vmatprep.subr.mxu0 0.0
    %262 = vmatpush1.msra.mxu0 0.0
    %263 = vmatprep.subr.mxu0 0.0
    %264 = vmatpush1.msra.mxu0 0.0
    %265 = vmatprep.subr.mxu0 0.0
    %266 = vmatpush1.msra.mxu0 0.0
    %267 = vmatprep.subr.mxu0 0.0
    %268 = vmatpush1.msra.mxu0 0.0
    %269 = vmatprep.subr.mxu0 0.0
    %270 = vmatpush1.msra.mxu0 0.0
    %271 = vmatprep.subr.mxu0 0.0
    %272 = vmatpush1.msra.mxu0 0.0
    %273 = vmatprep.subr.mxu0 0.0
    %274 = vmatpush1.msra.mxu0 0.0
    %275 = vmatprep.subr.mxu0 0.0
    %276 = vmatpush1.msra.mxu0 0.0
    %277 = vmatprep.subr.mxu0 0.0
    %278 = vmatpush1.msra.mxu0 0.0
    %279 = vmatprep.subr.mxu0 0.0
    %280 = vmatpush1.msra.mxu0 0.0
    %281 = vmatprep.subr.mxu0 0.0
    %282 = vmatpush1.msra.mxu0 0.0
    %283 = vmatprep.subr.mxu0 0.0
    %284 = vmatpush1.msra.mxu0 0.0
    %285 = vmatprep.subr.mxu0 0.0
    %286 = vmatpush1.msra.mxu0 0.0
    %287 = vmatprep.subr.mxu0 0.0
    %288 = vmatpush1.msra.mxu0 0.0
    %289 = vmatprep.subr.mxu0 0.0
    %290 = vmatpush1.msra.mxu0 0.0
    %291 = vmatprep.subr.mxu0 0.0
    %292 = vmatpush1.msra.mxu0 %v256
    %293 = vmatprep.subr.mxu0 0.0
    %294 = vmatpush2.msra.mxu0 0.0
    %295 = vmatprep.subr.mxu0 0.0
    %296 = vmatpush2.msra.mxu0 0.0
    %297 = vmatprep.subr.mxu0 0.0
    %298 = vmatpush2.msra.mxu0 0.0
    %299 = vmatprep.subr.mxu0 0.0
    %300 = vmatpush2.msra.mxu0 0.0
    %301 = vmatprep.subr.mxu0 0.0
    %302 = vmatpush2.msra.mxu0 0.0
    %303 = vmatprep.subr.mxu0 0.0
    %304 = vmatpush2.msra.mxu0 0.0
    %305 = vmatprep.subr.mxu0 0.0
    %306 = vmatpush2.msra.mxu0 0.0
    %307 = vmatprep.subr.mxu0 0.0
    %308 = vmatpush2.msra.mxu0 0.0
    %309 = vmatprep.subr.mxu0 0.0
    %310 = vmatpush2.msra.mxu0 0.0
    %311 = vmatprep.subr.mxu0 0.0
    %312 = vmatpush2.msra.mxu0 0.0
    %313 = vmatprep.subr.mxu0 0.0
    %314 = vmatpush2.msra.mxu0 0.0
    %315 = vmatprep.subr.mxu0 0.0
    %316 = vmatpush2.msra.mxu0 0.0
    %317 = vmatprep.subr.mxu0 0.0
    %318 = vmatpush2.msra.mxu0 0.0
    %319 = vmatprep.subr.mxu0 0.0
    %320 = vmatpush2.msra.mxu0 0.0
    %321 = vmatprep.subr.mxu0 0.0
    %322 = vmatpush2.msra.mxu0 0.0
    %323 = vmatprep.subr.mxu0 0.0
    %324 = vmatpush2.msra.mxu0 0.0
    %325 = vmatprep.mubr.f32.mxu0 0.0
    %326 = vmatmul.mubr.f32.gmra.mxu0 %v259
    %v327 = vpop.f32.mrf.mxu0
    %v328 = vadd.f32 0.0, %v327
    %v329 = vpop.f32.mrf.mxu0
    %330 = vdwg.mxu0
    %331 = vrot.lane.b32.xlu0 %v153, 120
    %v332 = vpop.permute.xlu0 %331
    %333 = vrot.lane.b32.xlu0 %v153, 88
    %v334 = vpop.permute.xlu0 %333
    %v335 = vsel %vm169, %v332, 0
    %v337 = vsel %vm169, %v334, 0
    %339 = vmatprep.subr.mxu0 0.0
    %340 = vmatpush1.xpose.msra.mxu0 0.0
    %341 = vmatprep.subr.mxu0 0.0
    %342 = vmatpush1.xpose.msra.mxu0 0.0
    %343 = vmatprep.subr.mxu0 0.0
    %344 = vmatpush1.xpose.msra.mxu0 0.0
    %345 = vmatprep.subr.mxu0 0.0
    %346 = vmatpush1.xpose.msra.mxu0 0.0
    %347 = vmatprep.subr.mxu0 0.0
    %348 = vmatpush1.xpose.msra.mxu0 0.0
    %349 = vmatprep.subr.mxu0 0.0
    %350 = vmatpush1.xpose.msra.mxu0 0.0
    %351 = vmatprep.subr.mxu0 0.0
    %352 = vmatpush1.xpose.msra.mxu0 0.0
    %353 = vmatprep.subr.mxu0 0.0
    %354 = vmatpush1.xpose.msra.mxu0 0.0
    %355 = vmatprep.subr.mxu0 0.0
    %356 = vmatpush1.xpose.msra.mxu0 0.0
    %357 = vmatprep.subr.mxu0 0.0
    %358 = vmatpush1.xpose.msra.mxu0 0.0
    %359 = vmatprep.subr.mxu0 0.0
    %360 = vmatpush1.xpose.msra.mxu0 0.0
    %361 = vmatprep.subr.mxu0 0.0
    %362 = vmatpush1.xpose.msra.mxu0 0.0
    %363 = vmatprep.subr.mxu0 0.0
    %364 = vmatpush1.xpose.msra.mxu0 0.0
    %365 = vmatprep.subr.mxu0 0.0
    %366 = vmatpush1.xpose.msra.mxu0 0.0
    %367 = vmatprep.subr.mxu0 0.0
    %368 = vmatpush1.xpose.msra.mxu0 0.0
    %369 = vmatprep.subr.mxu0 0.0
    %370 = vmatpush1.xpose.msra.mxu0 %v337
    %371 = vmatprep.subr.mxu0 0.0
    %372 = vmatpush2.xpose.msra.mxu0 0.0
    %373 = vmatprep.subr.mxu0 0.0
    %374 = vmatpush2.xpose.msra.mxu0 0.0
    %375 = vmatprep.subr.mxu0 0.0
    %376 = vmatpush2.xpose.msra.mxu0 0.0
    %377 = vmatprep.subr.mxu0 0.0
    %378 = vmatpush2.xpose.msra.mxu0 0.0
    %379 = vmatprep.subr.mxu0 0.0
    %380 = vmatpush2.xpose.msra.mxu0 0.0
    %381 = vmatprep.subr.mxu0 0.0
    %382 = vmatpush2.xpose.msra.mxu0 0.0
    %383 = vmatprep.subr.mxu0 0.0
    %384 = vmatpush2.xpose.msra.mxu0 0.0
    %385 = vmatprep.subr.mxu0 0.0
    %386 = vmatpush2.xpose.msra.mxu0 0.0
    %387 = vmatprep.subr.mxu0 0.0
    %388 = vmatpush2.xpose.msra.mxu0 0.0
    %389 = vmatprep.subr.mxu0 0.0
    %390 = vmatpush2.xpose.msra.mxu0 0.0
    %391 = vmatprep.subr.mxu0 0.0
    %392 = vmatpush2.xpose.msra.mxu0 0.0
    %393 = vmatprep.subr.mxu0 0.0
    %394 = vmatpush2.xpose.msra.mxu0 0.0
    %395 = vmatprep.subr.mxu0 0.0
    %396 = vmatpush2.xpose.msra.mxu0 0.0
    %397 = vmatprep.subr.mxu0 0.0
    %398 = vmatpush2.xpose.msra.mxu0 0.0
    %399 = vmatprep.subr.mxu0 0.0
    %400 = vmatpush2.xpose.msra.mxu0 0.0
    %401 = vmatprep.subr.mxu0 0.0
    %402 = vmatpush2.xpose.msra.mxu0 0.0
    %403 = vmatprep.mubr.f32.mxu0 0.0
    %404 = vmatmul.mubr.f32.gmra.mxu0 %v335
    %v405 = vpop.f32.mrf.mxu0
    %v406 = vadd.f32 %v165, %v405
    %v407 = vpop.f32.mrf.mxu0
    %408 = vdwg.mxu0
    %v409 = vsel %vm169, %v406, -inf
    %410 = vmax.xlane.f32.xlu0 %v409
    %v411 = vpop.xlane.xlu0 %410
    %v412 = vsub.f32 %v406, %v411
    %v413 = vmul.f32 %v412, 1.442695
    %v414 = vpow.pop %v413
    %v415 = vsel %vm169, %v414, 0.0
    %416 = vadd.xlane.f32.xlu0 %v415
    %v417 = vpop.xlane.xlu0 %416
    %v418 = vrcp.pop %v417
    %v419 = vmul.f32 %v414, %v418
    %420 = vrot.lane.b32.xlu0 %v153, 56
    %v421 = vpop.permute.xlu0 %420
    %v424 = vsel %vm169, %v419, 0
    %426 = vmatprep.subr.mxu0 0.0
    %427 = vmatpush1.msra.mxu0 0.0
    %428 = vmatprep.subr.mxu0 0.0
    %429 = vmatpush1.msra.mxu0 0.0
    %430 = vmatprep.subr.mxu0 0.0
    %431 = vmatpush1.msra.mxu0 0.0
    %432 = vmatprep.subr.mxu0 0.0
    %433 = vmatpush1.msra.mxu0 0.0
    %434 = vmatprep.subr.mxu0 0.0
    %435 = vmatpush1.msra.mxu0 0.0
    %436 = vmatprep.subr.mxu0 0.0
    %437 = vmatpush1.msra.mxu0 0.0
    %438 = vmatprep.subr.mxu0 0.0
    %439 = vmatpush1.msra.mxu0 0.0
    %440 = vmatprep.subr.mxu0 0.0
    %441 = vmatpush1.msra.mxu0 0.0
    %442 = vmatprep.subr.mxu0 0.0
    %443 = vmatpush1.msra.mxu0 0.0
    %444 = vmatprep.subr.mxu0 0.0
    %445 = vmatpush1.msra.mxu0 0.0
    %446 = vmatprep.subr.mxu0 0.0
    %447 = vmatpush1.msra.mxu0 0.0
    %448 = vmatprep.subr.mxu0 0.0
    %449 = vmatpush1.msra.mxu0 0.0
    %450 = vmatprep.subr.mxu0 0.0
    %451 = vmatpush1.msra.mxu0 0.0
    %452 = vmatprep.subr.mxu0 0.0
    %453 = vmatpush1.msra.mxu0 0.0
    %454 = vmatprep.subr.mxu0 0.0
    %455 = vmatpush1.msra.mxu0 0.0
    %456 = vmatprep.subr.mxu0 0.0
    %457 = vmatpush1.msra.mxu0 %v421
    %458 = vmatprep.subr.mxu0 0.0
    %459 = vmatpush2.msra.mxu0 0.0
    %460 = vmatprep.subr.mxu0 0.0
    %461 = vmatpush2.msra.mxu0 0.0
    %462 = vmatprep.subr.mxu0 0.0
    %463 = vmatpush2.msra.mxu0 0.0
    %464 = vmatprep.subr.mxu0 0.0
    %465 = vmatpush2.msra.mxu0 0.0
    %466 = vmatprep.subr.mxu0 0.0
    %467 = vmatpush2.msra.mxu0 0.0
    %468 = vmatprep.subr.mxu0 0.0
    %469 = vmatpush2.msra.mxu0 0.0
    %470 = vmatprep.subr.mxu0 0.0
    %471 = vmatpush2.msra.mxu0 0.0
    %472 = vmatprep.subr.mxu0 0.0
    %473 = vmatpush2.msra.mxu0 0.0
    %474 = vmatprep.subr.mxu0 0.0
    %475 = vmatpush2.msra.mxu0 0.0
    %476 = vmatprep.subr.mxu0 0.0
    %477 = vmatpush2.msra.mxu0 0.0
    %478 = vmatprep.subr.mxu0 0.0
    %479 = vmatpush2.msra.mxu0 0.0
    %480 = vmatprep.subr.mxu0 0.0
    %481 = vmatpush2.msra.mxu0 0.0
    %482 = vmatprep.subr.mxu0 0.0
    %483 = vmatpush2.msra.mxu0 0.0
    %484 = vmatprep.subr.mxu0 0.0
    %485 = vmatpush2.msra.mxu0 0.0
    %486 = vmatprep.subr.mxu0 0.0
    %487 = vmatpush2.msra.mxu0 0.0
    %488 = vmatprep.subr.mxu0 0.0
    %489 = vmatpush2.msra.mxu0 0.0
    %490 = vmatprep.mubr.f32.mxu0 0.0
    %491 = vmatmul.mubr.f32.gmra.mxu0 %v424
    %v492 = vpop.f32.mrf.mxu0
    %v493 = vadd.f32 0.0, %v492
    %v494 = vpop.f32.mrf.mxu0
    %495 = vdwg.mxu0
    %497 = vrot.lane.b32.xlu0 %v30, 32
    %v498 = vpop.permute.xlu0 %497
    %v501 = vsel %vm169, %v493, 0
    %503 = vmatprep.subr.mxu0 0.0
    %504 = vmatpush1.msra.mxu0 0.0
    %505 = vmatprep.subr.mxu0 0.0
    %506 = vmatpush1.msra.mxu0 0.0
    %507 = vmatprep.subr.mxu0 0.0
    %508 = vmatpush1.msra.mxu0 0.0
    %509 = vmatprep.subr.mxu0 0.0
    %510 = vmatpush1.msra.mxu0 0.0
    %511 = vmatprep.subr.mxu0 0.0
    %512 = vmatpush1.msra.mxu0 0.0
    %513 = vmatprep.subr.mxu0 0.0
    %514 = vmatpush1.msra.mxu0 0.0
    %515 = vmatprep.subr.mxu0 0.0
    %516 = vmatpush1.msra.mxu0 0.0
    %517 = vmatprep.subr.mxu0 0.0
    %518 = vmatpush1.msra.mxu0 0.0
    %519 = vmatprep.subr.mxu0 0.0
    %520 = vmatpush1.msra.mxu0 0.0
    %521 = vmatprep.subr.mxu0 0.0
    %522 = vmatpush1.msra.mxu0 0.0
    %523 = vmatprep.subr.mxu0 0.0
    %524 = vmatpush1.msra.mxu0 0.0
    %525 = vmatprep.subr.mxu0 0.0
    %526 = vmatpush1.msra.mxu0 0.0
    %527 = vmatprep.subr.mxu0 0.0
    %528 = vmatpush1.msra.mxu0 0.0
    %529 = vmatprep.subr.mxu0 0.0
    %530 = vmatpush1.msra.mxu0 0.0
    %531 = vmatprep.subr.mxu0 0.0
    %532 = vmatpush1.msra.mxu0 0.0
    %533 = vmatprep.subr.mxu0 0.0
    %534 = vmatpush1.msra.mxu0 %v498
    %535 = vmatprep.subr.mxu0 0.0
    %536 = vmatpush2.msra.mxu0 0.0
    %537 = vmatprep.subr.mxu0 0.0
    %538 = vmatpush2.msra.mxu0 0.0
    %539 = vmatprep.subr.mxu0 0.0
    %540 = vmatpush2.msra.mxu0 0.0
    %541 = vmatprep.subr.mxu0 0.0
    %542 = vmatpush2.msra.mxu0 0.0
    %543 = vmatprep.subr.mxu0 0.0
    %544 = vmatpush2.msra.mxu0 0.0
    %545 = vmatprep.subr.mxu0 0.0
    %546 = vmatpush2.msra.mxu0 0.0
    %547 = vmatprep.subr.mxu0 0.0
    %548 = vmatpush2.msra.mxu0 0.0
    %549 = vmatprep.subr.mxu0 0.0
    %550 = vmatpush2.msra.mxu0 0.0
    %551 = vmatprep.subr.mxu0 0.0
    %552 = vmatpush2.msra.mxu0 0.0
    %553 = vmatprep.subr.mxu0 0.0
    %554 = vmatpush2.msra.mxu0 0.0
    %555 = vmatprep.subr.mxu0 0.0
    %556 = vmatpush2.msra.mxu0 0.0
    %557 = vmatprep.subr.mxu0 0.0
    %558 = vmatpush2.msra.mxu0 0.0
    %559 = vmatprep.subr.mxu0 0.0
    %560 = vmatpush2.msra.mxu0 0.0
    %561 = vmatprep.subr.mxu0 0.0
    %562 = vmatpush2.msra.mxu0 0.0
    %563 = vmatprep.subr.mxu0 0.0
    %564 = vmatpush2.msra.mxu0 0.0
    %565 = vmatprep.subr.mxu0 0.0
    %566 = vmatpush2.msra.mxu0 0.0
    %567 = vmatprep.mubr.f32.mxu0 0.0
    %568 = vmatmul.mubr.f32.gmra.mxu0 %v501
    %v569 = vpop.f32.mrf.mxu0
    %v570 = vadd.f32 0.0, %v569
    %v571 = vpop.f32.mrf.mxu0
    %572 = vdwg.mxu0
    %574 = vrot.lane.b32.xlu0 %v28, 32
    %v575 = vpop.permute.xlu0 %574
    %v578 = vsel %vm169, %v328, 0
    %580 = vmatprep.subr.mxu0 0.0
    %581 = vmatpush1.msra.mxu0 0.0
    %582 = vmatprep.subr.mxu0 0.0
    %583 = vmatpush1.msra.mxu0 0.0
    %584 = vmatprep.subr.mxu0 0.0
    %585 = vmatpush1.msra.mxu0 0.0
    %586 = vmatprep.subr.mxu0 0.0
    %587 = vmatpush1.msra.mxu0 0.0
    %588 = vmatprep.subr.mxu0 0.0
    %589 = vmatpush1.msra.mxu0 0.0
    %590 = vmatprep.subr.mxu0 0.0
    %591 = vmatpush1.msra.mxu0 0.0
    %592 = vmatprep.subr.mxu0 0.0
    %593 = vmatpush1.msra.mxu0 0.0
    %594 = vmatprep.subr.mxu0 0.0
    %595 = vmatpush1.msra.mxu0 0.0
    %596 = vmatprep.subr.mxu0 0.0
    %597 = vmatpush1.msra.mxu0 0.0
    %598 = vmatprep.subr.mxu0 0.0
    %599 = vmatpush1.msra.mxu0 0.0
    %600 = vmatprep.subr.mxu0 0.0
    %601 = vmatpush1.msra.mxu0 0.0
    %602 = vmatprep.subr.mxu0 0.0
    %603 = vmatpush1.msra.mxu0 0.0
    %604 = vmatprep.subr.mxu0 0.0
    %605 = vmatpush1.msra.mxu0 0.0
    %606 = vmatprep.subr.mxu0 0.0
    %607 = vmatpush1.msra.mxu0 0.0
    %608 = vmatprep.subr.mxu0 0.0
    %609 = vmatpush1.msra.mxu0 0.0
    %610 = vmatprep.subr.mxu0 0.0
    %611 = vmatpush1.msra.mxu0 %v575
    %612 = vmatprep.subr.mxu0 0.0
    %613 = vmatpush2.msra.mxu0 0.0
    %614 = vmatprep.subr.mxu0 0.0
    %615 = vmatpush2.msra.mxu0 0.0
    %616 = vmatprep.subr.mxu0 0.0
    %617 = vmatpush2.msra.mxu0 0.0
    %618 = vmatprep.subr.mxu0 0.0
    %619 = vmatpush2.msra.mxu0 0.0
    %620 = vmatprep.subr.mxu0 0.0
    %621 = vmatpush2.msra.mxu0 0.0
    %622 = vmatprep.subr.mxu0 0.0
    %623 = vmatpush2.msra.mxu0 0.0
    %624 = vmatprep.subr.mxu0 0.0
    %625 = vmatpush2.msra.mxu0 0.0
    %626 = vmatprep.subr.mxu0 0.0
    %627 = vmatpush2.msra.mxu0 0.0
    %628 = vmatprep.subr.mxu0 0.0
    %629 = vmatpush2.msra.mxu0 0.0
    %630 = vmatprep.subr.mxu0 0.0
    %631 = vmatpush2.msra.mxu0 0.0
    %632 = vmatprep.subr.mxu0 0.0
    %633 = vmatpush2.msra.mxu0 0.0
    %634 = vmatprep.subr.mxu0 0.0
    %635 = vmatpush2.msra.mxu0 0.0
    %636 = vmatprep.subr.mxu0 0.0
    %637 = vmatpush2.msra.mxu0 0.0
    %638 = vmatprep.subr.mxu0 0.0
    %639 = vmatpush2.msra.mxu0 0.0
    %640 = vmatprep.subr.mxu0 0.0
    %641 = vmatpush2.msra.mxu0 0.0
    %642 = vmatprep.subr.mxu0 0.0
    %643 = vmatpush2.msra.mxu0 0.0
    %644 = vmatprep.mubr.f32.mxu0 0.0
    %645 = vmatmul.mubr.f32.gmra.mxu0 %v578
    %v646 = vpop.f32.mrf.mxu0
    %v647 = vadd.f32 %v570, %v646
    %v648 = vpop.f32.mrf.mxu0
    %649 = vdwg.mxu0
    %650 = vrot.lane.b32.xlu0 %v153, 112
    %v651 = vpop.permute.xlu0 %650
    %652 = vrot.lane.b32.xlu0 %v153, 80
    %v653 = vpop.permute.xlu0 %652
    %v654 = vsel %vm169, %v651, 0
    %v656 = vsel %vm169, %v653, 0
    %658 = vmatprep.subr.mxu0 0.0
    %659 = vmatpush1.xpose.msra.mxu0 0.0
    %660 = vmatprep.subr.mxu0 0.0
    %661 = vmatpush1.xpose.msra.mxu0 0.0
    %662 = vmatprep.subr.mxu0 0.0
    %663 = vmatpush1.xpose.msra.mxu0 0.0
    %664 = vmatprep.subr.mxu0 0.0
    %665 = vmatpush1.xpose.msra.mxu0 0.0
    %666 = vmatprep.subr.mxu0 0.0
    %667 = vmatpush1.xpose.msra.mxu0 0.0
    %668 = vmatprep.subr.mxu0 0.0
    %669 = vmatpush1.xpose.msra.mxu0 0.0
    %670 = vmatprep.subr.mxu0 0.0
    %671 = vmatpush1.xpose.msra.mxu0 0.0
    %672 = vmatprep.subr.mxu0 0.0
    %673 = vmatpush1.xpose.msra.mxu0 0.0
    %674 = vmatprep.subr.mxu0 0.0
    %675 = vmatpush1.xpose.msra.mxu0 0.0
    %676 = vmatprep.subr.mxu0 0.0
    %677 = vmatpush1.xpose.msra.mxu0 0.0
    %678 = vmatprep.subr.mxu0 0.0
    %679 = vmatpush1.xpose.msra.mxu0 0.0
    %680 = vmatprep.subr.mxu0 0.0
    %681 = vmatpush1.xpose.msra.mxu0 0.0
    %682 = vmatprep.subr.mxu0 0.0
    %683 = vmatpush1.xpose.msra.mxu0 0.0
    %684 = vmatprep.subr.mxu0 0.0
    %685 = vmatpush1.xpose.msra.mxu0 0.0
    %686 = vmatprep.subr.mxu0 0.0
    %687 = vmatpush1.xpose.msra.mxu0 0.0
    %688 = vmatprep.subr.mxu0 0.0
    %689 = vmatpush1.xpose.msra.mxu0 %v656
    %690 = vmatprep.subr.mxu0 0.0
    %691 = vmatpush2.xpose.msra.mxu0 0.0
    %692 = vmatprep.subr.mxu0 0.0
    %693 = vmatpush2.xpose.msra.mxu0 0.0
    %694 = vmatprep.subr.mxu0 0.0
    %695 = vmatpush2.xpose.msra.mxu0 0.0
    %696 = vmatprep.subr.mxu0 0.0
    %697 = vmatpush2.xpose.msra.mxu0 0.0
    %698 = vmatprep.subr.mxu0 0.0
    %699 = vmatpush2.xpose.msra.mxu0 0.0
    %700 = vmatprep.subr.mxu0 0.0
    %701 = vmatpush2.xpose.msra.mxu0 0.0
    %702 = vmatprep.subr.mxu0 0.0
    %703 = vmatpush2.xpose.msra.mxu0 0.0
    %704 = vmatprep.subr.mxu0 0.0
    %705 = vmatpush2.xpose.msra.mxu0 0.0
    %706 = vmatprep.subr.mxu0 0.0
    %707 = vmatpush2.xpose.msra.mxu0 0.0
    %708 = vmatprep.subr.mxu0 0.0
    %709 = vmatpush2.xpose.msra.mxu0 0.0
    %710 = vmatprep.subr.mxu0 0.0
    %711 = vmatpush2.xpose.msra.mxu0 0.0
    %712 = vmatprep.subr.mxu0 0.0
    %713 = vmatpush2.xpose.msra.mxu0 0.0
    %714 = vmatprep.subr.mxu0 0.0
    %715 = vmatpush2.xpose.msra.mxu0 0.0
    %716 = vmatprep.subr.mxu0 0.0
    %717 = vmatpush2.xpose.msra.mxu0 0.0
    %718 = vmatprep.subr.mxu0 0.0
    %719 = vmatpush2.xpose.msra.mxu0 0.0
    %720 = vmatprep.subr.mxu0 0.0
    %721 = vmatpush2.xpose.msra.mxu0 0.0
    %722 = vmatprep.mubr.f32.mxu0 0.0
    %723 = vmatmul.mubr.f32.gmra.mxu0 %v654
    %v724 = vpop.f32.mrf.mxu0
    %v725 = vadd.f32 %v165, %v724
    %v726 = vpop.f32.mrf.mxu0
    %727 = vdwg.mxu0
    %v728 = vsel %vm169, %v725, -inf
    %729 = vmax.xlane.f32.xlu0 %v728
    %v730 = vpop.xlane.xlu0 %729
    %v731 = vsub.f32 %v725, %v730
    %v732 = vmul.f32 %v731, 1.442695
    %v733 = vpow.pop %v732
    %v734 = vsel %vm169, %v733, 0.0
    %735 = vadd.xlane.f32.xlu0 %v734
    %v736 = vpop.xlane.xlu0 %735
    %v737 = vrcp.pop %v736
    %v738 = vmul.f32 %v733, %v737
    %739 = vrot.lane.b32.xlu0 %v153, 48
    %v740 = vpop.permute.xlu0 %739
    %v743 = vsel %vm169, %v738, 0
    %745 = vmatprep.subr.mxu0 0.0
    %746 = vmatpush1.msra.mxu0 0.0
    %747 = vmatprep.subr.mxu0 0.0
    %748 = vmatpush1.msra.mxu0 0.0
    %749 = vmatprep.subr.mxu0 0.0
    %750 = vmatpush1.msra.mxu0 0.0
    %751 = vmatprep.subr.mxu0 0.0
    %752 = vmatpush1.msra.mxu0 0.0
    %753 = vmatprep.subr.mxu0 0.0
    %754 = vmatpush1.msra.mxu0 0.0
    %755 = vmatprep.subr.mxu0 0.0
    %756 = vmatpush1.msra.mxu0 0.0
    %757 = vmatprep.subr.mxu0 0.0
    %758 = vmatpush1.msra.mxu0 0.0
    %759 = vmatprep.subr.mxu0 0.0
    %760 = vmatpush1.msra.mxu0 0.0
    %761 = vmatprep.subr.mxu0 0.0
    %762 = vmatpush1.msra.mxu0 0.0
    %763 = vmatprep.subr.mxu0 0.0
    %764 = vmatpush1.msra.mxu0 0.0
    %765 = vmatprep.subr.mxu0 0.0
    %766 = vmatpush1.msra.mxu0 0.0
    %767 = vmatprep.subr.mxu0 0.0
    %768 = vmatpush1.msra.mxu0 0.0
    %769 = vmatprep.subr.mxu0 0.0
    %770 = vmatpush1.msra.mxu0 0.0
    %771 = vmatprep.subr.mxu0 0.0
    %772 = vmatpush1.msra.mxu0 0.0
    %773 = vmatprep.subr.mxu0 0.0
    %774 = vmatpush1.msra.mxu0 0.0
    %775 = vmatprep.subr.mxu0 0.0
    %776 = vmatpush1.msra.mxu0 %v740
    %777 = vmatprep.subr.mxu0 0.0
    %778 = vmatpush2.msra.mxu0 0.0
    %779 = vmatprep.subr.mxu0 0.0
    %780 = vmatpush2.msra.mxu0 0.0
    %781 = vmatprep.subr.mxu0 0.0
    %782 = vmatpush2.msra.mxu0 0.0
    %783 = vmatprep.subr.mxu0 0.0
    %784 = vmatpush2.msra.mxu0 0.0
    %785 = vmatprep.subr.mxu0 0.0
    %786 = vmatpush2.msra.mxu0 0.0
    %787 = vmatprep.subr.mxu0 0.0
    %788 = vmatpush2.msra.mxu0 0.0
    %789 = vmatprep.subr.mxu0 0.0
    %790 = vmatpush2.msra.mxu0 0.0
    %791 = vmatprep.subr.mxu0 0.0
    %792 = vmatpush2.msra.mxu0 0.0
    %793 = vmatprep.subr.mxu0 0.0
    %794 = vmatpush2.msra.mxu0 0.0
    %795 = vmatprep.subr.mxu0 0.0
    %796 = vmatpush2.msra.mxu0 0.0
    %797 = vmatprep.subr.mxu0 0.0
    %798 = vmatpush2.msra.mxu0 0.0
    %799 = vmatprep.subr.mxu0 0.0
    %800 = vmatpush2.msra.mxu0 0.0
    %801 = vmatprep.subr.mxu0 0.0
    %802 = vmatpush2.msra.mxu0 0.0
    %803 = vmatprep.subr.mxu0 0.0
    %804 = vmatpush2.msra.mxu0 0.0
    %805 = vmatprep.subr.mxu0 0.0
    %806 = vmatpush2.msra.mxu0 0.0
    %807 = vmatprep.subr.mxu0 0.0
    %808 = vmatpush2.msra.mxu0 0.0
    %809 = vmatprep.mubr.f32.mxu0 0.0
    %810 = vmatmul.mubr.f32.gmra.mxu0 %v743
    %v811 = vpop.f32.mrf.mxu0
    %v812 = vadd.f32 0.0, %v811
    %v813 = vpop.f32.mrf.mxu0
    %814 = vdwg.mxu0
    %816 = vrot.lane.b32.xlu0 %v32, 32
    %v817 = vpop.permute.xlu0 %816
    %v820 = vsel %vm169, %v812, 0
    %822 = vmatprep.subr.mxu0 0.0
    %823 = vmatpush1.msra.mxu0 0.0
    %824 = vmatprep.subr.mxu0 0.0
    %825 = vmatpush1.msra.mxu0 0.0
    %826 = vmatprep.subr.mxu0 0.0
    %827 = vmatpush1.msra.mxu0 0.0
    %828 = vmatprep.subr.mxu0 0.0
    %829 = vmatpush1.msra.mxu0 0.0
    %830 = vmatprep.subr.mxu0 0.0
    %831 = vmatpush1.msra.mxu0 0.0
    %832 = vmatprep.subr.mxu0 0.0
    %833 = vmatpush1.msra.mxu0 0.0
    %834 = vmatprep.subr.mxu0 0.0
    %835 = vmatpush1.msra.mxu0 0.0
    %836 = vmatprep.subr.mxu0 0.0
    %837 = vmatpush1.msra.mxu0 0.0
    %838 = vmatprep.subr.mxu0 0.0
    %839 = vmatpush1.msra.mxu0 0.0
    %840 = vmatprep.subr.mxu0 0.0
    %841 = vmatpush1.msra.mxu0 0.0
    %842 = vmatprep.subr.mxu0 0.0
    %843 = vmatpush1.msra.mxu0 0.0
    %844 = vmatprep.subr.mxu0 0.0
    %845 = vmatpush1.msra.mxu0 0.0
    %846 = vmatprep.subr.mxu0 0.0
    %847 = vmatpush1.msra.mxu0 0.0
    %848 = vmatprep.subr.mxu0 0.0
    %849 = vmatpush1.msra.mxu0 0.0
    %850 = vmatprep.subr.mxu0 0.0
    %851 = vmatpush1.msra.mxu0 0.0
    %852 = vmatprep.subr.mxu0 0.0
    %853 = vmatpush1.msra.mxu0 %v817
    %854 = vmatprep.subr.mxu0 0.0
    %855 = vmatpush2.msra.mxu0 0.0
    %856 = vmatprep.subr.mxu0 0.0
    %857 = vmatpush2.msra.mxu0 0.0
    %858 = vmatprep.subr.mxu0 0.0
    %859 = vmatpush2.msra.mxu0 0.0
    %860 = vmatprep.subr.mxu0 0.0
    %861 = vmatpush2.msra.mxu0 0.0
    %862 = vmatprep.subr.mxu0 0.0
    %863 = vmatpush2.msra.mxu0 0.0
    %864 = vmatprep.subr.mxu0 0.0
    %865 = vmatpush2.msra.mxu0 0.0
    %866 = vmatprep.subr.mxu0 0.0
    %867 = vmatpush2.msra.mxu0 0.0
    %868 = vmatprep.subr.mxu0 0.0
    %869 = vmatpush2.msra.mxu0 0.0
    %870 = vmatprep.subr.mxu0 0.0
    %871 = vmatpush2.msra.mxu0 0.0
    %872 = vmatprep.subr.mxu0 0.0
    %873 = vmatpush2.msra.mxu0 0.0
    %874 = vmatprep.subr.mxu0 0.0
    %875 = vmatpush2.msra.mxu0 0.0
    %876 = vmatprep.subr.mxu0 0.0
    %877 = vmatpush2.msra.mxu0 0.0
    %878 = vmatprep.subr.mxu0 0.0
    %879 = vmatpush2.msra.mxu0 0.0
    %880 = vmatprep.subr.mxu0 0.0
    %881 = vmatpush2.msra.mxu0 0.0
    %882 = vmatprep.subr.mxu0 0.0
    %883 = vmatpush2.msra.mxu0 0.0
    %884 = vmatprep.subr.mxu0 0.0
    %885 = vmatpush2.msra.mxu0 0.0
    %886 = vmatprep.mubr.f32.mxu0 0.0
    %887 = vmatmul.mubr.f32.gmra.mxu0 %v820
    %v888 = vpop.f32.mrf.mxu0
    %v889 = vadd.f32 0.0, %v888
    %v890 = vpop.f32.mrf.mxu0
    %891 = vdwg.mxu0
    %v892 = vadd.f32 %v647, %v889
    %893 = vrot.lane.b32.xlu0 %v153, 104
    %v894 = vpop.permute.xlu0 %893
    %895 = vrot.lane.b32.xlu0 %v153, 72
    %v896 = vpop.permute.xlu0 %895
    %v897 = vsel %vm169, %v894, 0
    %v899 = vsel %vm169, %v896, 0
    %901 = vmatprep.subr.mxu0 0.0
    %902 = vmatpush1.xpose.msra.mxu0 0.0
    %903 = vmatprep.subr.mxu0 0.0
    %904 = vmatpush1.xpose.msra.mxu0 0.0
    %905 = vmatprep.subr.mxu0 0.0
    %906 = vmatpush1.xpose.msra.mxu0 0.0
    %907 = vmatprep.subr.mxu0 0.0
    %908 = vmatpush1.xpose.msra.mxu0 0.0
    %909 = vmatprep.subr.mxu0 0.0
    %910 = vmatpush1.xpose.msra.mxu0 0.0
    %911 = vmatprep.subr.mxu0 0.0
    %912 = vmatpush1.xpose.msra.mxu0 0.0
    %913 = vmatprep.subr.mxu0 0.0
    %914 = vmatpush1.xpose.msra.mxu0 0.0
    %915 = vmatprep.subr.mxu0 0.0
    %916 = vmatpush1.xpose.msra.mxu0 0.0
    %917 = vmatprep.subr.mxu0 0.0
    %918 = vmatpush1.xpose.msra.mxu0 0.0
    %919 = vmatprep.subr.mxu0 0.0
    %920 = vmatpush1.xpose.msra.mxu0 0.0
    %921 = vmatprep.subr.mxu0 0.0
    %922 = vmatpush1.xpose.msra.mxu0 0.0
    %923 = vmatprep.subr.mxu0 0.0
    %924 = vmatpush1.xpose.msra.mxu0 0.0
    %925 = vmatprep.subr.mxu0 0.0
    %926 = vmatpush1.xpose.msra.mxu0 0.0
    %927 = vmatprep.subr.mxu0 0.0
    %928 = vmatpush1.xpose.msra.mxu0 0.0
    %929 = vmatprep.subr.mxu0 0.0
    %930 = vmatpush1.xpose.msra.mxu0 0.0
    %931 = vmatprep.subr.mxu0 0.0
    %932 = vmatpush1.xpose.msra.mxu0 %v899
    %933 = vmatprep.subr.mxu0 0.0
    %934 = vmatpush2.xpose.msra.mxu0 0.0
    %935 = vmatprep.subr.mxu0 0.0
    %936 = vmatpush2.xpose.msra.mxu0 0.0
    %937 = vmatprep.subr.mxu0 0.0
    %938 = vmatpush2.xpose.msra.mxu0 0.0
    %939 = vmatprep.subr.mxu0 0.0
    %940 = vmatpush2.xpose.msra.mxu0 0.0
    %941 = vmatprep.subr.mxu0 0.0
    %942 = vmatpush2.xpose.msra.mxu0 0.0
    %943 = vmatprep.subr.mxu0 0.0
    %944 = vmatpush2.xpose.msra.mxu0 0.0
    %945 = vmatprep.subr.mxu0 0.0
    %946 = vmatpush2.xpose.msra.mxu0 0.0
    %947 = vmatprep.subr.mxu0 0.0
    %948 = vmatpush2.xpose.msra.mxu0 0.0
    %949 = vmatprep.subr.mxu0 0.0
    %950 = vmatpush2.xpose.msra.mxu0 0.0
    %951 = vmatprep.subr.mxu0 0.0
    %952 = vmatpush2.xpose.msra.mxu0 0.0
    %953 = vmatprep.subr.mxu0 0.0
    %954 = vmatpush2.xpose.msra.mxu0 0.0
    %955 = vmatprep.subr.mxu0 0.0
    %956 = vmatpush2.xpose.msra.mxu0 0.0
    %957 = vmatprep.subr.mxu0 0.0
    %958 = vmatpush2.xpose.msra.mxu0 0.0
    %959 = vmatprep.subr.mxu0 0.0
    %960 = vmatpush2.xpose.msra.mxu0 0.0
    %961 = vmatprep.subr.mxu0 0.0
    %962 = vmatpush2.xpose.msra.mxu0 0.0
    %963 = vmatprep.subr.mxu0 0.0
    %964 = vmatpush2.xpose.msra.mxu0 0.0
    %965 = vmatprep.mubr.f32.mxu0 0.0
    %966 = vmatmul.mubr.f32.gmra.mxu0 %v897
    %v967 = vpop.f32.mrf.mxu0
    %v968 = vadd.f32 %v165, %v967
    %v969 = vpop.f32.mrf.mxu0
    %970 = vdwg.mxu0
    %v971 = vsel %vm169, %v968, -inf
    %972 = vmax.xlane.f32.xlu0 %v971
    %v973 = vpop.xlane.xlu0 %972
    %v974 = vsub.f32 %v968, %v973
    %v975 = vmul.f32 %v974, 1.442695
    %v976 = vpow.pop %v975
    %v977 = vsel %vm169, %v976, 0.0
    %978 = vadd.xlane.f32.xlu0 %v977
    %v979 = vpop.xlane.xlu0 %978
    %v980 = vrcp.pop %v979
    %v981 = vmul.f32 %v976, %v980
    %982 = vrot.lane.b32.xlu0 %v153, 40
    %v983 = vpop.permute.xlu0 %982
    %v986 = vsel %vm169, %v981, 0
    %988 = vmatprep.subr.mxu0 0.0
    %989 = vmatpush1.msra.mxu0 0.0
    %990 = vmatprep.subr.mxu0 0.0
    %991 = vmatpush1.msra.mxu0 0.0
    %992 = vmatprep.subr.mxu0 0.0
    %993 = vmatpush1.msra.mxu0 0.0
    %994 = vmatprep.subr.mxu0 0.0
    %995 = vmatpush1.msra.mxu0 0.0
    %996 = vmatprep.subr.mxu0 0.0
    %997 = vmatpush1.msra.mxu0 0.0
    %998 = vmatprep.subr.mxu0 0.0
    %999 = vmatpush1.msra.mxu0 0.0
    %1000 = vmatprep.subr.mxu0 0.0
    %1001 = vmatpush1.msra.mxu0 0.0
    %1002 = vmatprep.subr.mxu0 0.0
    %1003 = vmatpush1.msra.mxu0 0.0
    %1004 = vmatprep.subr.mxu0 0.0
    %1005 = vmatpush1.msra.mxu0 0.0
    %1006 = vmatprep.subr.mxu0 0.0
    %1007 = vmatpush1.msra.mxu0 0.0
    %1008 = vmatprep.subr.mxu0 0.0
    %1009 = vmatpush1.msra.mxu0 0.0
    %1010 = vmatprep.subr.mxu0 0.0
    %1011 = vmatpush1.msra.mxu0 0.0
    %1012 = vmatprep.subr.mxu0 0.0
    %1013 = vmatpush1.msra.mxu0 0.0
    %1014 = vmatprep.subr.mxu0 0.0
    %1015 = vmatpush1.msra.mxu0 0.0
    %1016 = vmatprep.subr.mxu0 0.0
    %1017 = vmatpush1.msra.mxu0 0.0
    %1018 = vmatprep.subr.mxu0 0.0
    %1019 = vmatpush1.msra.mxu0 %v983
    %1020 = vmatprep.subr.mxu0 0.0
    %1021 = vmatpush2.msra.mxu0 0.0
    %1022 = vmatprep.subr.mxu0 0.0
    %1023 = vmatpush2.msra.mxu0 0.0
    %1024 = vmatprep.subr.mxu0 0.0
    %1025 = vmatpush2.msra.mxu0 0.0
    %1026 = vmatprep.subr.mxu0 0.0
    %1027 = vmatpush2.msra.mxu0 0.0
    %1028 = vmatprep.subr.mxu0 0.0
    %1029 = vmatpush2.msra.mxu0 0.0
    %1030 = vmatprep.subr.mxu0 0.0
    %1031 = vmatpush2.msra.mxu0 0.0
    %1032 = vmatprep.subr.mxu0 0.0
    %1033 = vmatpush2.msra.mxu0 0.0
    %1034 = vmatprep.subr.mxu0 0.0
    %1035 = vmatpush2.msra.mxu0 0.0
    %1036 = vmatprep.subr.mxu0 0.0
    %1037 = vmatpush2.msra.mxu0 0.0
    %1038 = vmatprep.subr.mxu0 0.0
    %1039 = vmatpush2.msra.mxu0 0.0
    %1040 = vmatprep.subr.mxu0 0.0
    %1041 = vmatpush2.msra.mxu0 0.0
    %1042 = vmatprep.subr.mxu0 0.0
    %1043 = vmatpush2.msra.mxu0 0.0
    %1044 = vmatprep.subr.mxu0 0.0
    %1045 = vmatpush2.msra.mxu0 0.0
    %1046 = vmatprep.subr.mxu0 0.0
    %1047 = vmatpush2.msra.mxu0 0.0
    %1048 = vmatprep.subr.mxu0 0.0
    %1049 = vmatpush2.msra.mxu0 0.0
    %1050 = vmatprep.subr.mxu0 0.0
    %1051 = vmatpush2.msra.mxu0 0.0
    %1052 = vmatprep.mubr.f32.mxu0 0.0
    %1053 = vmatmul.mubr.f32.gmra.mxu0 %v986
    %v1054 = vpop.f32.mrf.mxu0
    %v1055 = vadd.f32 0.0, %v1054
    %v1056 = vpop.f32.mrf.mxu0
    %1057 = vdwg.mxu0
    %1059 = vrot.lane.b32.xlu0 %v34, 32
    %v1060 = vpop.permute.xlu0 %1059
    %v1063 = vsel %vm169, %v1055, 0
    %1065 = vmatprep.subr.mxu0 0.0
    %1066 = vmatpush1.msra.mxu0 0.0
    %1067 = vmatprep.subr.mxu0 0.0
    %1068 = vmatpush1.msra.mxu0 0.0
    %1069 = vmatprep.subr.mxu0 0.0
    %1070 = vmatpush1.msra.mxu0 0.0
    %1071 = vmatprep.subr.mxu0 0.0
    %1072 = vmatpush1.msra.mxu0 0.0
    %1073 = vmatprep.subr.mxu0 0.0
    %1074 = vmatpush1.msra.mxu0 0.0
    %1075 = vmatprep.subr.mxu0 0.0
    %1076 = vmatpush1.msra.mxu0 0.0
    %1077 = vmatprep.subr.mxu0 0.0
    %1078 = vmatpush1.msra.mxu0 0.0
    %1079 = vmatprep.subr.mxu0 0.0
    %1080 = vmatpush1.msra.mxu0 0.0
    %1081 = vmatprep.subr.mxu0 0.0
    %1082 = vmatpush1.msra.mxu0 0.0
    %1083 = vmatprep.subr.mxu0 0.0
    %1084 = vmatpush1.msra.mxu0 0.0
    %1085 = vmatprep.subr.mxu0 0.0
    %1086 = vmatpush1.msra.mxu0 0.0
    %1087 = vmatprep.subr.mxu0 0.0
    %1088 = vmatpush1.msra.mxu0 0.0
    %1089 = vmatprep.subr.mxu0 0.0
    %1090 = vmatpush1.msra.mxu0 0.0
    %1091 = vmatprep.subr.mxu0 0.0
    %1092 = vmatpush1.msra.mxu0 0.0
    %1093 = vmatprep.subr.mxu0 0.0
    %1094 = vmatpush1.msra.mxu0 0.0
    %1095 = vmatprep.subr.mxu0 0.0
    %1096 = vmatpush1.msra.mxu0 %v1060
    %1097 = vmatprep.subr.mxu0 0.0
    %1098 = vmatpush2.msra.mxu0 0.0
    %1099 = vmatprep.subr.mxu0 0.0
    %1100 = vmatpush2.msra.mxu0 0.0
    %1101 = vmatprep.subr.mxu0 0.0
    %1102 = vmatpush2.msra.mxu0 0.0
    %1103 = vmatprep.subr.mxu0 0.0
    %1104 = vmatpush2.msra.mxu0 0.0
    %1105 = vmatprep.subr.mxu0 0.0
    %1106 = vmatpush2.msra.mxu0 0.0
    %1107 = vmatprep.subr.mxu0 0.0
    %1108 = vmatpush2.msra.mxu0 0.0
    %1109 = vmatprep.subr.mxu0 0.0
    %1110 = vmatpush2.msra.mxu0 0.0
    %1111 = vmatprep.subr.mxu0 0.0
    %1112 = vmatpush2.msra.mxu0 0.0
    %1113 = vmatprep.subr.mxu0 0.0
    %1114 = vmatpush2.msra.mxu0 0.0
    %1115 = vmatprep.subr.mxu0 0.0
    %1116 = vmatpush2.msra.mxu0 0.0
    %1117 = vmatprep.subr.mxu0 0.0
    %1118 = vmatpush2.msra.mxu0 0.0
    %1119 = vmatprep.subr.mxu0 0.0
    %1120 = vmatpush2.msra.mxu0 0.0
    %1121 = vmatprep.subr.mxu0 0.0
    %1122 = vmatpush2.msra.mxu0 0.0
    %1123 = vmatprep.subr.mxu0 0.0
    %1124 = vmatpush2.msra.mxu0 0.0
    %1125 = vmatprep.subr.mxu0 0.0
    %1126 = vmatpush2.msra.mxu0 0.0
    %1127 = vmatprep.subr.mxu0 0.0
    %1128 = vmatpush2.msra.mxu0 0.0
    %1129 = vmatprep.mubr.f32.mxu0 0.0
    %1130 = vmatmul.mubr.f32.gmra.mxu0 %v1063
    %v1131 = vpop.f32.mrf.mxu0
    %v1132 = vadd.f32 0.0, %v1131
    %v1133 = vpop.f32.mrf.mxu0
    %1134 = vdwg.mxu0
    %v1135 = vadd.f32 %v892, %v1132
    %v1136 = vld [vmem:[%s3 + $0x9] sm:$0x1]
    %v1137 = vlaneseq
    %v1138 = vshrl.u32 %v1137, 7
    %v1139 = vsub.s32 0, %v1138
    %v1140 = vrot.slane %v1136, %v1139
    %1142 = vrot.lane.b32.xlu0 %v158, 96
    %v1143 = vpop.permute.xlu0 %1142
    %v1144 = vsel %vm169, %v158, 0
    %v1146 = vsel %vm169, %v1143, 0
    %1148 = vmatprep.subr.mxu0 0.0
    %1149 = vmatpush1.xpose.msra.mxu0 0.0
    %1150 = vmatprep.subr.mxu0 0.0
    %1151 = vmatpush1.xpose.msra.mxu0 0.0
    %1152 = vmatprep.subr.mxu0 0.0
    %1153 = vmatpush1.xpose.msra.mxu0 0.0
    %1154 = vmatprep.subr.mxu0 0.0
    %1155 = vmatpush1.xpose.msra.mxu0 0.0
    %1156 = vmatprep.subr.mxu0 0.0
    %1157 = vmatpush1.xpose.msra.mxu0 0.0
    %1158 = vmatprep.subr.mxu0 0.0
    %1159 = vmatpush1.xpose.msra.mxu0 0.0
    %1160 = vmatprep.subr.mxu0 0.0
    %1161 = vmatpush1.xpose.msra.mxu0 0.0
    %1162 = vmatprep.subr.mxu0 0.0
    %1163 = vmatpush1.xpose.msra.mxu0 0.0
    %1164 = vmatprep.subr.mxu0 0.0
    %1165 = vmatpush1.xpose.msra.mxu0 0.0
    %1166 = vmatprep.subr.mxu0 0.0
    %1167 = vmatpush1.xpose.msra.mxu0 0.0
    %1168 = vmatprep.subr.mxu0 0.0
    %1169 = vmatpush1.xpose.msra.mxu0 0.0
    %1170 = vmatprep.subr.mxu0 0.0
    %1171 = vmatpush1.xpose.msra.mxu0 0.0
    %1172 = vmatprep.subr.mxu0 0.0
    %1173 = vmatpush1.xpose.msra.mxu0 0.0
    %1174 = vmatprep.subr.mxu0 0.0
    %1175 = vmatpush1.xpose.msra.mxu0 0.0
    %1176 = vmatprep.subr.mxu0 0.0
    %1177 = vmatpush1.xpose.msra.mxu0 0.0
    %1178 = vmatprep.subr.mxu0 0.0
    %1179 = vmatpush1.xpose.msra.mxu0 %v1146
    %1180 = vmatprep.subr.mxu0 0.0
    %1181 = vmatpush2.xpose.msra.mxu0 0.0
    %1182 = vmatprep.subr.mxu0 0.0
    %1183 = vmatpush2.xpose.msra.mxu0 0.0
    %1184 = vmatprep.subr.mxu0 0.0
    %1185 = vmatpush2.xpose.msra.mxu0 0.0
    %1186 = vmatprep.subr.mxu0 0.0
    %1187 = vmatpush2.xpose.msra.mxu0 0.0
    %1188 = vmatprep.subr.mxu0 0.0
    %1189 = vmatpush2.xpose.msra.mxu0 0.0
    %1190 = vmatprep.subr.mxu0 0.0
    %1191 = vmatpush2.xpose.msra.mxu0 0.0
    %1192 = vmatprep.subr.mxu0 0.0
    %1193 = vmatpush2.xpose.msra.mxu0 0.0
    %1194 = vmatprep.subr.mxu0 0.0
    %1195 = vmatpush2.xpose.msra.mxu0 0.0
    %1196 = vmatprep.subr.mxu0 0.0
    %1197 = vmatpush2.xpose.msra.mxu0 0.0
    %1198 = vmatprep.subr.mxu0 0.0
    %1199 = vmatpush2.xpose.msra.mxu0 0.0
    %1200 = vmatprep.subr.mxu0 0.0
    %1201 = vmatpush2.xpose.msra.mxu0 0.0
    %1202 = vmatprep.subr.mxu0 0.0
    %1203 = vmatpush2.xpose.msra.mxu0 0.0
    %1204 = vmatprep.subr.mxu0 0.0
    %1205 = vmatpush2.xpose.msra.mxu0 0.0
    %1206 = vmatprep.subr.mxu0 0.0
    %1207 = vmatpush2.xpose.msra.mxu0 0.0
    %1208 = vmatprep.subr.mxu0 0.0
    %1209 = vmatpush2.xpose.msra.mxu0 0.0
    %1210 = vmatprep.subr.mxu0 0.0
    %1211 = vmatpush2.xpose.msra.mxu0 0.0
    %1212 = vmatprep.mubr.f32.mxu0 0.0
    %1213 = vmatmul.mubr.f32.gmra.mxu0 %v1144
    %v1214 = vpop.f32.mrf.mxu0
    %v1215 = vadd.f32 %v1140, %v1214
    %v1216 = vpop.f32.mrf.mxu0
    %1217 = vdwg.mxu0
    %v1218 = vsel %vm169, %v1215, -inf
    %1219 = vmax.xlane.f32.xlu0 %v1218
    %v1220 = vpop.xlane.xlu0 %1219
    %v1221 = vsub.f32 %v1215, %v1220
    %v1222 = vmul.f32 %v1221, 1.442695
    %v1223 = vpow.pop %v1222
    %v1224 = vsel %vm169, %v1223, 0.0
    %1225 = vadd.xlane.f32.xlu0 %v1224
    %v1226 = vpop.xlane.xlu0 %1225
    %v1227 = vrcp.pop %v1226
    %v1228 = vmul.f32 %v1223, %v1227
    %1229 = vrot.lane.b32.xlu0 %v158, 64
    %v1230 = vpop.permute.xlu0 %1229
    %v1233 = vsel %vm169, %v1228, 0
    %1235 = vmatprep.subr.mxu0 0.0
    %1236 = vmatpush1.msra.mxu0 0.0
    %1237 = vmatprep.subr.mxu0 0.0
    %1238 = vmatpush1.msra.mxu0 0.0
    %1239 = vmatprep.subr.mxu0 0.0
    %1240 = vmatpush1.msra.mxu0 0.0
    %1241 = vmatprep.subr.mxu0 0.0
    %1242 = vmatpush1.msra.mxu0 0.0
    %1243 = vmatprep.subr.mxu0 0.0
    %1244 = vmatpush1.msra.mxu0 0.0
    %1245 = vmatprep.subr.mxu0 0.0
    %1246 = vmatpush1.msra.mxu0 0.0
    %1247 = vmatprep.subr.mxu0 0.0
    %1248 = vmatpush1.msra.mxu0 0.0
    %1249 = vmatprep.subr.mxu0 0.0
    %1250 = vmatpush1.msra.mxu0 0.0
    %1251 = vmatprep.subr.mxu0 0.0
    %1252 = vmatpush1.msra.mxu0 0.0
    %1253 = vmatprep.subr.mxu0 0.0
    %1254 = vmatpush1.msra.mxu0 0.0
    %1255 = vmatprep.subr.mxu0 0.0
    %1256 = vmatpush1.msra.mxu0 0.0
    %1257 = vmatprep.subr.mxu0 0.0
    %1258 = vmatpush1.msra.mxu0 0.0
    %1259 = vmatprep.subr.mxu0 0.0
    %1260 = vmatpush1.msra.mxu0 0.0
    %1261 = vmatprep.subr.mxu0 0.0
    %1262 = vmatpush1.msra.mxu0 0.0
    %1263 = vmatprep.subr.mxu0 0.0
    %1264 = vmatpush1.msra.mxu0 0.0
    %1265 = vmatprep.subr.mxu0 0.0
    %1266 = vmatpush1.msra.mxu0 %v1230
    %1267 = vmatprep.subr.mxu0 0.0
    %1268 = vmatpush2.msra.mxu0 0.0
    %1269 = vmatprep.subr.mxu0 0.0
    %1270 = vmatpush2.msra.mxu0 0.0
    %1271 = vmatprep.subr.mxu0 0.0
    %1272 = vmatpush2.msra.mxu0 0.0
    %1273 = vmatprep.subr.mxu0 0.0
    %1274 = vmatpush2.msra.mxu0 0.0
    %1275 = vmatprep.subr.mxu0 0.0
    %1276 = vmatpush2.msra.mxu0 0.0
    %1277 = vmatprep.subr.mxu0 0.0
    %1278 = vmatpush2.msra.mxu0 0.0
    %1279 = vmatprep.subr.mxu0 0.0
    %1280 = vmatpush2.msra.mxu0 0.0
    %1281 = vmatprep.subr.mxu0 0.0
    %1282 = vmatpush2.msra.mxu0 0.0
    %1283 = vmatprep.subr.mxu0 0.0
    %1284 = vmatpush2.msra.mxu0 0.0
    %1285 = vmatprep.subr.mxu0 0.0
    %1286 = vmatpush2.msra.mxu0 0.0
    %1287 = vmatprep.subr.mxu0 0.0
    %1288 = vmatpush2.msra.mxu0 0.0
    %1289 = vmatprep.subr.mxu0 0.0
    %1290 = vmatpush2.msra.mxu0 0.0
    %1291 = vmatprep.subr.mxu0 0.0
    %1292 = vmatpush2.msra.mxu0 0.0
    %1293 = vmatprep.subr.mxu0 0.0
    %1294 = vmatpush2.msra.mxu0 0.0
    %1295 = vmatprep.subr.mxu0 0.0
    %1296 = vmatpush2.msra.mxu0 0.0
    %1297 = vmatprep.subr.mxu0 0.0
    %1298 = vmatpush2.msra.mxu0 0.0
    %1299 = vmatprep.mubr.f32.mxu0 0.0
    %1300 = vmatmul.mubr.f32.gmra.mxu0 %v1233
    %v1301 = vpop.f32.mrf.mxu0
    %v1302 = vadd.f32 0.0, %v1301
    %v1303 = vpop.f32.mrf.mxu0
    %1304 = vdwg.mxu0
    %1305 = vrot.lane.b32.xlu0 %v158, 120
    %v1306 = vpop.permute.xlu0 %1305
    %1307 = vrot.lane.b32.xlu0 %v158, 88
    %v1308 = vpop.permute.xlu0 %1307
    %v1309 = vsel %vm169, %v1306, 0
    %v1311 = vsel %vm169, %v1308, 0
    %1313 = vmatprep.subr.mxu0 0.0
    %1314 = vmatpush1.xpose.msra.mxu0 0.0
    %1315 = vmatprep.subr.mxu0 0.0
    %1316 = vmatpush1.xpose.msra.mxu0 0.0
    %1317 = vmatprep.subr.mxu0 0.0
    %1318 = vmatpush1.xpose.msra.mxu0 0.0
    %1319 = vmatprep.subr.mxu0 0.0
    %1320 = vmatpush1.xpose.msra.mxu0 0.0
    %1321 = vmatprep.subr.mxu0 0.0
    %1322 = vmatpush1.xpose.msra.mxu0 0.0
    %1323 = vmatprep.subr.mxu0 0.0
    %1324 = vmatpush1.xpose.msra.mxu0 0.0
    %1325 = vmatprep.subr.mxu0 0.0
    %1326 = vmatpush1.xpose.msra.mxu0 0.0
    %1327 = vmatprep.subr.mxu0 0.0
    %1328 = vmatpush1.xpose.msra.mxu0 0.0
    %1329 = vmatprep.subr.mxu0 0.0
    %1330 = vmatpush1.xpose.msra.mxu0 0.0
    %1331 = vmatprep.subr.mxu0 0.0
    %1332 = vmatpush1.xpose.msra.mxu0 0.0
    %1333 = vmatprep.subr.mxu0 0.0
    %1334 = vmatpush1.xpose.msra.mxu0 0.0
    %1335 = vmatprep.subr.mxu0 0.0
    %1336 = vmatpush1.xpose.msra.mxu0 0.0
    %1337 = vmatprep.subr.mxu0 0.0
    %1338 = vmatpush1.xpose.msra.mxu0 0.0
    %1339 = vmatprep.subr.mxu0 0.0
    %1340 = vmatpush1.xpose.msra.mxu0 0.0
    %1341 = vmatprep.subr.mxu0 0.0
    %1342 = vmatpush1.xpose.msra.mxu0 0.0
    %1343 = vmatprep.subr.mxu0 0.0
    %1344 = vmatpush1.xpose.msra.mxu0 %v1311
    %1345 = vmatprep.subr.mxu0 0.0
    %1346 = vmatpush2.xpose.msra.mxu0 0.0
    %1347 = vmatprep.subr.mxu0 0.0
    %1348 = vmatpush2.xpose.msra.mxu0 0.0
    %1349 = vmatprep.subr.mxu0 0.0
    %1350 = vmatpush2.xpose.msra.mxu0 0.0
    %1351 = vmatprep.subr.mxu0 0.0
    %1352 = vmatpush2.xpose.msra.mxu0 0.0
    %1353 = vmatprep.subr.mxu0 0.0
    %1354 = vmatpush2.xpose.msra.mxu0 0.0
    %1355 = vmatprep.subr.mxu0 0.0
    %1356 = vmatpush2.xpose.msra.mxu0 0.0
    %1357 = vmatprep.subr.mxu0 0.0
    %1358 = vmatpush2.xpose.msra.mxu0 0.0
    %1359 = vmatprep.subr.mxu0 0.0
    %1360 = vmatpush2.xpose.msra.mxu0 0.0
    %1361 = vmatprep.subr.mxu0 0.0
    %1362 = vmatpush2.xpose.msra.mxu0 0.0
    %1363 = vmatprep.subr.mxu0 0.0
    %1364 = vmatpush2.xpose.msra.mxu0 0.0
    %1365 = vmatprep.subr.mxu0 0.0
    %1366 = vmatpush2.xpose.msra.mxu0 0.0
    %1367 = vmatprep.subr.mxu0 0.0
    %1368 = vmatpush2.xpose.msra.mxu0 0.0
    %1369 = vmatprep.subr.mxu0 0.0
    %1370 = vmatpush2.xpose.msra.mxu0 0.0
    %1371 = vmatprep.subr.mxu0 0.0
    %1372 = vmatpush2.xpose.msra.mxu0 0.0
    %1373 = vmatprep.subr.mxu0 0.0
    %1374 = vmatpush2.xpose.msra.mxu0 0.0
    %1375 = vmatprep.subr.mxu0 0.0
    %1376 = vmatpush2.xpose.msra.mxu0 0.0
    %1377 = vmatprep.mubr.f32.mxu0 0.0
    %1378 = vmatmul.mubr.f32.gmra.mxu0 %v1309
    %v1379 = vpop.f32.mrf.mxu0
    %v1380 = vadd.f32 %v1140, %v1379
    %v1381 = vpop.f32.mrf.mxu0
    %1382 = vdwg.mxu0
    %v1383 = vsel %vm169, %v1380, -inf
    %1384 = vmax.xlane.f32.xlu0 %v1383
    %v1385 = vpop.xlane.xlu0 %1384
    %v1386 = vsub.f32 %v1380, %v1385
    %v1387 = vmul.f32 %v1386, 1.442695
    %v1388 = vpow.pop %v1387
    %v1389 = vsel %vm169, %v1388, 0.0
    %1390 = vadd.xlane.f32.xlu0 %v1389
    %v1391 = vpop.xlane.xlu0 %1390
    %v1392 = vrcp.pop %v1391
    %v1393 = vmul.f32 %v1388, %v1392
    %1394 = vrot.lane.b32.xlu0 %v158, 56
    %v1395 = vpop.permute.xlu0 %1394
    %v1398 = vsel %vm169, %v1393, 0
    %1400 = vmatprep.subr.mxu0 0.0
    %1401 = vmatpush1.msra.mxu0 0.0
    %1402 = vmatprep.subr.mxu0 0.0
    %1403 = vmatpush1.msra.mxu0 0.0
    %1404 = vmatprep.subr.mxu0 0.0
    %1405 = vmatpush1.msra.mxu0 0.0
    %1406 = vmatprep.subr.mxu0 0.0
    %1407 = vmatpush1.msra.mxu0 0.0
    %1408 = vmatprep.subr.mxu0 0.0
    %1409 = vmatpush1.msra.mxu0 0.0
    %1410 = vmatprep.subr.mxu0 0.0
    %1411 = vmatpush1.msra.mxu0 0.0
    %1412 = vmatprep.subr.mxu0 0.0
    %1413 = vmatpush1.msra.mxu0 0.0
    %1414 = vmatprep.subr.mxu0 0.0
    %1415 = vmatpush1.msra.mxu0 0.0
    %1416 = vmatprep.subr.mxu0 0.0
    %1417 = vmatpush1.msra.mxu0 0.0
    %1418 = vmatprep.subr.mxu0 0.0
    %1419 = vmatpush1.msra.mxu0 0.0
    %1420 = vmatprep.subr.mxu0 0.0
    %1421 = vmatpush1.msra.mxu0 0.0
    %1422 = vmatprep.subr.mxu0 0.0
    %1423 = vmatpush1.msra.mxu0 0.0
    %1424 = vmatprep.subr.mxu0 0.0
    %1425 = vmatpush1.msra.mxu0 0.0
    %1426 = vmatprep.subr.mxu0 0.0
    %1427 = vmatpush1.msra.mxu0 0.0
    %1428 = vmatprep.subr.mxu0 0.0
    %1429 = vmatpush1.msra.mxu0 0.0
    %1430 = vmatprep.subr.mxu0 0.0
    %1431 = vmatpush1.msra.mxu0 %v1395
    %1432 = vmatprep.subr.mxu0 0.0
    %1433 = vmatpush2.msra.mxu0 0.0
    %1434 = vmatprep.subr.mxu0 0.0
    %1435 = vmatpush2.msra.mxu0 0.0
    %1436 = vmatprep.subr.mxu0 0.0
    %1437 = vmatpush2.msra.mxu0 0.0
    %1438 = vmatprep.subr.mxu0 0.0
    %1439 = vmatpush2.msra.mxu0 0.0
    %1440 = vmatprep.subr.mxu0 0.0
    %1441 = vmatpush2.msra.mxu0 0.0
    %1442 = vmatprep.subr.mxu0 0.0
    %1443 = vmatpush2.msra.mxu0 0.0
    %1444 = vmatprep.subr.mxu0 0.0
    %1445 = vmatpush2.msra.mxu0 0.0
    %1446 = vmatprep.subr.mxu0 0.0
    %1447 = vmatpush2.msra.mxu0 0.0
    %1448 = vmatprep.subr.mxu0 0.0
    %1449 = vmatpush2.msra.mxu0 0.0
    %1450 = vmatprep.subr.mxu0 0.0
    %1451 = vmatpush2.msra.mxu0 0.0
    %1452 = vmatprep.subr.mxu0 0.0
    %1453 = vmatpush2.msra.mxu0 0.0
    %1454 = vmatprep.subr.mxu0 0.0
    %1455 = vmatpush2.msra.mxu0 0.0
    %1456 = vmatprep.subr.mxu0 0.0
    %1457 = vmatpush2.msra.mxu0 0.0
    %1458 = vmatprep.subr.mxu0 0.0
    %1459 = vmatpush2.msra.mxu0 0.0
    %1460 = vmatprep.subr.mxu0 0.0
    %1461 = vmatpush2.msra.mxu0 0.0
    %1462 = vmatprep.subr.mxu0 0.0
    %1463 = vmatpush2.msra.mxu0 0.0
    %1464 = vmatprep.mubr.f32.mxu0 0.0
    %1465 = vmatmul.mubr.f32.gmra.mxu0 %v1398
    %v1466 = vpop.f32.mrf.mxu0
    %v1467 = vadd.f32 0.0, %v1466
    %v1468 = vpop.f32.mrf.mxu0
    %1469 = vdwg.mxu0
    %v1471 = vsel %vm169, %v1467, 0
    %1473 = vmatprep.subr.mxu0 0.0
    %1474 = vmatpush1.msra.mxu0 0.0
    %1475 = vmatprep.subr.mxu0 0.0
    %1476 = vmatpush1.msra.mxu0 0.0
    %1477 = vmatprep.subr.mxu0 0.0
    %1478 = vmatpush1.msra.mxu0 0.0
    %1479 = vmatprep.subr.mxu0 0.0
    %1480 = vmatpush1.msra.mxu0 0.0
    %1481 = vmatprep.subr.mxu0 0.0
    %1482 = vmatpush1.msra.mxu0 0.0
    %1483 = vmatprep.subr.mxu0 0.0
    %1484 = vmatpush1.msra.mxu0 0.0
    %1485 = vmatprep.subr.mxu0 0.0
    %1486 = vmatpush1.msra.mxu0 0.0
    %1487 = vmatprep.subr.mxu0 0.0
    %1488 = vmatpush1.msra.mxu0 0.0
    %1489 = vmatprep.subr.mxu0 0.0
    %1490 = vmatpush1.msra.mxu0 0.0
    %1491 = vmatprep.subr.mxu0 0.0
    %1492 = vmatpush1.msra.mxu0 0.0
    %1493 = vmatprep.subr.mxu0 0.0
    %1494 = vmatpush1.msra.mxu0 0.0
    %1495 = vmatprep.subr.mxu0 0.0
    %1496 = vmatpush1.msra.mxu0 0.0
    %1497 = vmatprep.subr.mxu0 0.0
    %1498 = vmatpush1.msra.mxu0 0.0
    %1499 = vmatprep.subr.mxu0 0.0
    %1500 = vmatpush1.msra.mxu0 0.0
    %1501 = vmatprep.subr.mxu0 0.0
    %1502 = vmatpush1.msra.mxu0 0.0
    %1503 = vmatprep.subr.mxu0 0.0
    %1504 = vmatpush1.msra.mxu0 %v498
    %1505 = vmatprep.subr.mxu0 0.0
    %1506 = vmatpush2.msra.mxu0 0.0
    %1507 = vmatprep.subr.mxu0 0.0
    %1508 = vmatpush2.msra.mxu0 0.0
    %1509 = vmatprep.subr.mxu0 0.0
    %1510 = vmatpush2.msra.mxu0 0.0
    %1511 = vmatprep.subr.mxu0 0.0
    %1512 = vmatpush2.msra.mxu0 0.0
    %1513 = vmatprep.subr.mxu0 0.0
    %1514 = vmatpush2.msra.mxu0 0.0
    %1515 = vmatprep.subr.mxu0 0.0
    %1516 = vmatpush2.msra.mxu0 0.0
    %1517 = vmatprep.subr.mxu0 0.0
    %1518 = vmatpush2.msra.mxu0 0.0
    %1519 = vmatprep.subr.mxu0 0.0
    %1520 = vmatpush2.msra.mxu0 0.0
    %1521 = vmatprep.subr.mxu0 0.0
    %1522 = vmatpush2.msra.mxu0 0.0
    %1523 = vmatprep.subr.mxu0 0.0
    %1524 = vmatpush2.msra.mxu0 0.0
    %1525 = vmatprep.subr.mxu0 0.0
    %1526 = vmatpush2.msra.mxu0 0.0
    %1527 = vmatprep.subr.mxu0 0.0
    %1528 = vmatpush2.msra.mxu0 0.0
    %1529 = vmatprep.subr.mxu0 0.0
    %1530 = vmatpush2.msra.mxu0 0.0
    %1531 = vmatprep.subr.mxu0 0.0
    %1532 = vmatpush2.msra.mxu0 0.0
    %1533 = vmatprep.subr.mxu0 0.0
    %1534 = vmatpush2.msra.mxu0 0.0
    %1535 = vmatprep.subr.mxu0 0.0
    %1536 = vmatpush2.msra.mxu0 0.0
    %1537 = vmatprep.mubr.f32.mxu0 0.0
    %1538 = vmatmul.mubr.f32.gmra.mxu0 %v1471
    %v1539 = vpop.f32.mrf.mxu0
    %v1540 = vadd.f32 0.0, %v1539
    %v1541 = vpop.f32.mrf.mxu0
    %1542 = vdwg.mxu0
    %v1544 = vsel %vm169, %v1302, 0
    %1546 = vmatprep.subr.mxu0 0.0
    %1547 = vmatpush1.msra.mxu0 0.0
    %1548 = vmatprep.subr.mxu0 0.0
    %1549 = vmatpush1.msra.mxu0 0.0
    %1550 = vmatprep.subr.mxu0 0.0
    %1551 = vmatpush1.msra.mxu0 0.0
    %1552 = vmatprep.subr.mxu0 0.0
    %1553 = vmatpush1.msra.mxu0 0.0
    %1554 = vmatprep.subr.mxu0 0.0
    %1555 = vmatpush1.msra.mxu0 0.0
    %1556 = vmatprep.subr.mxu0 0.0
    %1557 = vmatpush1.msra.mxu0 0.0
    %1558 = vmatprep.subr.mxu0 0.0
    %1559 = vmatpush1.msra.mxu0 0.0
    %1560 = vmatprep.subr.mxu0 0.0
    %1561 = vmatpush1.msra.mxu0 0.0
    %1562 = vmatprep.subr.mxu0 0.0
    %1563 = vmatpush1.msra.mxu0 0.0
    %1564 = vmatprep.subr.mxu0 0.0
    %1565 = vmatpush1.msra.mxu0 0.0
    %1566 = vmatprep.subr.mxu0 0.0
    %1567 = vmatpush1.msra.mxu0 0.0
    %1568 = vmatprep.subr.mxu0 0.0
    %1569 = vmatpush1.msra.mxu0 0.0
    %1570 = vmatprep.subr.mxu0 0.0
    %1571 = vmatpush1.msra.mxu0 0.0
    %1572 = vmatprep.subr.mxu0 0.0
    %1573 = vmatpush1.msra.mxu0 0.0
    %1574 = vmatprep.subr.mxu0 0.0
    %1575 = vmatpush1.msra.mxu0 0.0
    %1576 = vmatprep.subr.mxu0 0.0
    %1577 = vmatpush1.msra.mxu0 %v575
    %1578 = vmatprep.subr.mxu0 0.0
    %1579 = vmatpush2.msra.mxu0 0.0
    %1580 = vmatprep.subr.mxu0 0.0
    %1581 = vmatpush2.msra.mxu0 0.0
    %1582 = vmatprep.subr.mxu0 0.0
    %1583 = vmatpush2.msra.mxu0 0.0
    %1584 = vmatprep.subr.mxu0 0.0
    %1585 = vmatpush2.msra.mxu0 0.0
    %1586 = vmatprep.subr.mxu0 0.0
    %1587 = vmatpush2.msra.mxu0 0.0
    %1588 = vmatprep.subr.mxu0 0.0
    %1589 = vmatpush2.msra.mxu0 0.0
    %1590 = vmatprep.subr.mxu0 0.0
    %1591 = vmatpush2.msra.mxu0 0.0
    %1592 = vmatprep.subr.mxu0 0.0
    %1593 = vmatpush2.msra.mxu0 0.0
    %1594 = vmatprep.subr.mxu0 0.0
    %1595 = vmatpush2.msra.mxu0 0.0
    %1596 = vmatprep.subr.mxu0 0.0
    %1597 = vmatpush2.msra.mxu0 0.0
    %1598 = vmatprep.subr.mxu0 0.0
    %1599 = vmatpush2.msra.mxu0 0.0
    %1600 = vmatprep.subr.mxu0 0.0
    %1601 = vmatpush2.msra.mxu0 0.0
    %1602 = vmatprep.subr.mxu0 0.0
    %1603 = vmatpush2.msra.mxu0 0.0
    %1604 = vmatprep.subr.mxu0 0.0
    %1605 = vmatpush2.msra.mxu0 0.0
    %1606 = vmatprep.subr.mxu0 0.0
    %1607 = vmatpush2.msra.mxu0 0.0
    %1608 = vmatprep.subr.mxu0 0.0
    %1609 = vmatpush2.msra.mxu0 0.0
    %1610 = vmatprep.mubr.f32.mxu0 0.0
    %1611 = vmatmul.mubr.f32.gmra.mxu0 %v1544
    %v1612 = vpop.f32.mrf.mxu0
    %v1613 = vadd.f32 %v1540, %v1612
    %v1614 = vpop.f32.mrf.mxu0
    %1615 = vdwg.mxu0
    %1616 = vrot.lane.b32.xlu0 %v158, 112
    %v1617 = vpop.permute.xlu0 %1616
    %1618 = vrot.lane.b32.xlu0 %v158, 80
    %v1619 = vpop.permute.xlu0 %1618
    %v1620 = vsel %vm169, %v1617, 0
    %v1622 = vsel %vm169, %v1619, 0
    %1624 = vmatprep.subr.mxu0 0.0
    %1625 = vmatpush1.xpose.msra.mxu0 0.0
    %1626 = vmatprep.subr.mxu0 0.0
    %1627 = vmatpush1.xpose.msra.mxu0 0.0
    %1628 = vmatprep.subr.mxu0 0.0
    %1629 = vmatpush1.xpose.msra.mxu0 0.0
    %1630 = vmatprep.subr.mxu0 0.0
    %1631 = vmatpush1.xpose.msra.mxu0 0.0
    %1632 = vmatprep.subr.mxu0 0.0
    %1633 = vmatpush1.xpose.msra.mxu0 0.0
    %1634 = vmatprep.subr.mxu0 0.0
    %1635 = vmatpush1.xpose.msra.mxu0 0.0
    %1636 = vmatprep.subr.mxu0 0.0
    %1637 = vmatpush1.xpose.msra.mxu0 0.0
    %1638 = vmatprep.subr.mxu0 0.0
    %1639 = vmatpush1.xpose.msra.mxu0 0.0
    %1640 = vmatprep.subr.mxu0 0.0
    %1641 = vmatpush1.xpose.msra.mxu0 0.0
    %1642 = vmatprep.subr.mxu0 0.0
    %1643 = vmatpush1.xpose.msra.mxu0 0.0
    %1644 = vmatprep.subr.mxu0 0.0
    %1645 = vmatpush1.xpose.msra.mxu0 0.0
    %1646 = vmatprep.subr.mxu0 0.0
    %1647 = vmatpush1.xpose.msra.mxu0 0.0
    %1648 = vmatprep.subr.mxu0 0.0
    %1649 = vmatpush1.xpose.msra.mxu0 0.0
    %1650 = vmatprep.subr.mxu0 0.0
    %1651 = vmatpush1.xpose.msra.mxu0 0.0
    %1652 = vmatprep.subr.mxu0 0.0
    %1653 = vmatpush1.xpose.msra.mxu0 0.0
    %1654 = vmatprep.subr.mxu0 0.0
    %1655 = vmatpush1.xpose.msra.mxu0 %v1622
    %1656 = vmatprep.subr.mxu0 0.0
    %1657 = vmatpush2.xpose.msra.mxu0 0.0
    %1658 = vmatprep.subr.mxu0 0.0
    %1659 = vmatpush2.xpose.msra.mxu0 0.0
    %1660 = vmatprep.subr.mxu0 0.0
    %1661 = vmatpush2.xpose.msra.mxu0 0.0
    %1662 = vmatprep.subr.mxu0 0.0
    %1663 = vmatpush2.xpose.msra.mxu0 0.0
    %1664 = vmatprep.subr.mxu0 0.0
    %1665 = vmatpush2.xpose.msra.mxu0 0.0
    %1666 = vmatprep.subr.mxu0 0.0
    %1667 = vmatpush2.xpose.msra.mxu0 0.0
    %1668 = vmatprep.subr.mxu0 0.0
    %1669 = vmatpush2.xpose.msra.mxu0 0.0
    %1670 = vmatprep.subr.mxu0 0.0
    %1671 = vmatpush2.xpose.msra.mxu0 0.0
    %1672 = vmatprep.subr.mxu0 0.0
    %1673 = vmatpush2.xpose.msra.mxu0 0.0
    %1674 = vmatprep.subr.mxu0 0.0
    %1675 = vmatpush2.xpose.msra.mxu0 0.0
    %1676 = vmatprep.subr.mxu0 0.0
    %1677 = vmatpush2.xpose.msra.mxu0 0.0
    %1678 = vmatprep.subr.mxu0 0.0
    %1679 = vmatpush2.xpose.msra.mxu0 0.0
    %1680 = vmatprep.subr.mxu0 0.0
    %1681 = vmatpush2.xpose.msra.mxu0 0.0
    %1682 = vmatprep.subr.mxu0 0.0
    %1683 = vmatpush2.xpose.msra.mxu0 0.0
    %1684 = vmatprep.subr.mxu0 0.0
    %1685 = vmatpush2.xpose.msra.mxu0 0.0
    %1686 = vmatprep.subr.mxu0 0.0
    %1687 = vmatpush2.xpose.msra.mxu0 0.0
    %1688 = vmatprep.mubr.f32.mxu0 0.0
    %1689 = vmatmul.mubr.f32.gmra.mxu0 %v1620
    %v1690 = vpop.f32.mrf.mxu0
    %v1691 = vadd.f32 %v1140, %v1690
    %v1692 = vpop.f32.mrf.mxu0
    %1693 = vdwg.mxu0
    %v1694 = vsel %vm169, %v1691, -inf
    %1695 = vmax.xlane.f32.xlu0 %v1694
    %v1696 = vpop.xlane.xlu0 %1695
    %v1697 = vsub.f32 %v1691, %v1696
    %v1698 = vmul.f32 %v1697, 1.442695
    %v1699 = vpow.pop %v1698
    %v1700 = vsel %vm169, %v1699, 0.0
    %1701 = vadd.xlane.f32.xlu0 %v1700
    %v1702 = vpop.xlane.xlu0 %1701
    %v1703 = vrcp.pop %v1702
    %v1704 = vmul.f32 %v1699, %v1703
    %1705 = vrot.lane.b32.xlu0 %v158, 48
    %v1706 = vpop.permute.xlu0 %1705
    %v1709 = vsel %vm169, %v1704, 0
    %1711 = vmatprep.subr.mxu0 0.0
    %1712 = vmatpush1.msra.mxu0 0.0
    %1713 = vmatprep.subr.mxu0 0.0
    %1714 = vmatpush1.msra.mxu0 0.0
    %1715 = vmatprep.subr.mxu0 0.0
    %1716 = vmatpush1.msra.mxu0 0.0
    %1717 = vmatprep.subr.mxu0 0.0
    %1718 = vmatpush1.msra.mxu0 0.0
    %1719 = vmatprep.subr.mxu0 0.0
    %1720 = vmatpush1.msra.mxu0 0.0
    %1721 = vmatprep.subr.mxu0 0.0
    %1722 = vmatpush1.msra.mxu0 0.0
    %1723 = vmatprep.subr.mxu0 0.0
    %1724 = vmatpush1.msra.mxu0 0.0
    %1725 = vmatprep.subr.mxu0 0.0
    %1726 = vmatpush1.msra.mxu0 0.0
    %1727 = vmatprep.subr.mxu0 0.0
    %1728 = vmatpush1.msra.mxu0 0.0
    %1729 = vmatprep.subr.mxu0 0.0
    %1730 = vmatpush1.msra.mxu0 0.0
    %1731 = vmatprep.subr.mxu0 0.0
    %1732 = vmatpush1.msra.mxu0 0.0
    %1733 = vmatprep.subr.mxu0 0.0
    %1734 = vmatpush1.msra.mxu0 0.0
    %1735 = vmatprep.subr.mxu0 0.0
    %1736 = vmatpush1.msra.mxu0 0.0
    %1737 = vmatprep.subr.mxu0 0.0
    %1738 = vmatpush1.msra.mxu0 0.0
    %1739 = vmatprep.subr.mxu0 0.0
    %1740 = vmatpush1.msra.mxu0 0.0
    %1741 = vmatprep.subr.mxu0 0.0
    %1742 = vmatpush1.msra.mxu0 %v1706
    %1743 = vmatprep.subr.mxu0 0.0
    %1744 = vmatpush2.msra.mxu0 0.0
    %1745 = vmatprep.subr.mxu0 0.0
    %1746 = vmatpush2.msra.mxu0 0.0
    %1747 = vmatprep.subr.mxu0 0.0
    %1748 = vmatpush2.msra.mxu0 0.0
    %1749 = vmatprep.subr.mxu0 0.0
    %1750 = vmatpush2.msra.mxu0 0.0
    %1751 = vmatprep.subr.mxu0 0.0
    %1752 = vmatpush2.msra.mxu0 0.0
    %1753 = vmatprep.subr.mxu0 0.0
    %1754 = vmatpush2.msra.mxu0 0.0
    %1755 = vmatprep.subr.mxu0 0.0
    %1756 = vmatpush2.msra.mxu0 0.0
    %1757 = vmatprep.subr.mxu0 0.0
    %1758 = vmatpush2.msra.mxu0 0.0
    %1759 = vmatprep.subr.mxu0 0.0
    %1760 = vmatpush2.msra.mxu0 0.0
    %1761 = vmatprep.subr.mxu0 0.0
    %1762 = vmatpush2.msra.mxu0 0.0
    %1763 = vmatprep.subr.mxu0 0.0
    %1764 = vmatpush2.msra.mxu0 0.0
    %1765 = vmatprep.subr.mxu0 0.0
    %1766 = vmatpush2.msra.mxu0 0.0
    %1767 = vmatprep.subr.mxu0 0.0
    %1768 = vmatpush2.msra.mxu0 0.0
    %1769 = vmatprep.subr.mxu0 0.0
    %1770 = vmatpush2.msra.mxu0 0.0
    %1771 = vmatprep.subr.mxu0 0.0
    %1772 = vmatpush2.msra.mxu0 0.0
    %1773 = vmatprep.subr.mxu0 0.0
    %1774 = vmatpush2.msra.mxu0 0.0
    %1775 = vmatprep.mubr.f32.mxu0 0.0
    %1776 = vmatmul.mubr.f32.gmra.mxu0 %v1709
    %v1777 = vpop.f32.mrf.mxu0
    %v1778 = vadd.f32 0.0, %v1777
    %v1779 = vpop.f32.mrf.mxu0
    %1780 = vdwg.mxu0
    %v1782 = vsel %vm169, %v1778, 0
    %1784 = vmatprep.subr.mxu0 0.0
    %1785 = vmatpush1.msra.mxu0 0.0
    %1786 = vmatprep.subr.mxu0 0.0
    %1787 = vmatpush1.msra.mxu0 0.0
    %1788 = vmatprep.subr.mxu0 0.0
    %1789 = vmatpush1.msra.mxu0 0.0
    %1790 = vmatprep.subr.mxu0 0.0
    %1791 = vmatpush1.msra.mxu0 0.0
    %1792 = vmatprep.subr.mxu0 0.0
    %1793 = vmatpush1.msra.mxu0 0.0
    %1794 = vmatprep.subr.mxu0 0.0
    %1795 = vmatpush1.msra.mxu0 0.0
    %1796 = vmatprep.subr.mxu0 0.0
    %1797 = vmatpush1.msra.mxu0 0.0
    %1798 = vmatprep.subr.mxu0 0.0
    %1799 = vmatpush1.msra.mxu0 0.0
    %1800 = vmatprep.subr.mxu0 0.0
    %1801 = vmatpush1.msra.mxu0 0.0
    %1802 = vmatprep.subr.mxu0 0.0
    %1803 = vmatpush1.msra.mxu0 0.0
    %1804 = vmatprep.subr.mxu0 0.0
    %1805 = vmatpush1.msra.mxu0 0.0
    %1806 = vmatprep.subr.mxu0 0.0
    %1807 = vmatpush1.msra.mxu0 0.0
    %1808 = vmatprep.subr.mxu0 0.0
    %1809 = vmatpush1.msra.mxu0 0.0
    %1810 = vmatprep.subr.mxu0 0.0
    %1811 = vmatpush1.msra.mxu0 0.0
    %1812 = vmatprep.subr.mxu0 0.0
    %1813 = vmatpush1.msra.mxu0 0.0
    %1814 = vmatprep.subr.mxu0 0.0
    %1815 = vmatpush1.msra.mxu0 %v817
    %1816 = vmatprep.subr.mxu0 0.0
    %1817 = vmatpush2.msra.mxu0 0.0
    %1818 = vmatprep.subr.mxu0 0.0
    %1819 = vmatpush2.msra.mxu0 0.0
    %1820 = vmatprep.subr.mxu0 0.0
    %1821 = vmatpush2.msra.mxu0 0.0
    %1822 = vmatprep.subr.mxu0 0.0
    %1823 = vmatpush2.msra.mxu0 0.0
    %1824 = vmatprep.subr.mxu0 0.0
    %1825 = vmatpush2.msra.mxu0 0.0
    %1826 = vmatprep.subr.mxu0 0.0
    %1827 = vmatpush2.msra.mxu0 0.0
    %1828 = vmatprep.subr.mxu0 0.0
    %1829 = vmatpush2.msra.mxu0 0.0
    %1830 = vmatprep.subr.mxu0 0.0
    %1831 = vmatpush2.msra.mxu0 0.0
    %1832 = vmatprep.subr.mxu0 0.0
    %1833 = vmatpush2.msra.mxu0 0.0
    %1834 = vmatprep.subr.mxu0 0.0
    %1835 = vmatpush2.msra.mxu0 0.0
    %1836 = vmatprep.subr.mxu0 0.0
    %1837 = vmatpush2.msra.mxu0 0.0
    %1838 = vmatprep.subr.mxu0 0.0
    %1839 = vmatpush2.msra.mxu0 0.0
    %1840 = vmatprep.subr.mxu0 0.0
    %1841 = vmatpush2.msra.mxu0 0.0
    %1842 = vmatprep.subr.mxu0 0.0
    %1843 = vmatpush2.msra.mxu0 0.0
    %1844 = vmatprep.subr.mxu0 0.0
    %1845 = vmatpush2.msra.mxu0 0.0
    %1846 = vmatprep.subr.mxu0 0.0
    %1847 = vmatpush2.msra.mxu0 0.0
    %1848 = vmatprep.mubr.f32.mxu0 0.0
    %1849 = vmatmul.mubr.f32.gmra.mxu0 %v1782
    %v1850 = vpop.f32.mrf.mxu0
    %v1851 = vadd.f32 0.0, %v1850
    %v1852 = vpop.f32.mrf.mxu0
    %1853 = vdwg.mxu0
    %v1854 = vadd.f32 %v1613, %v1851
    %1855 = vrot.lane.b32.xlu0 %v158, 104
    %v1856 = vpop.permute.xlu0 %1855
    %1857 = vrot.lane.b32.xlu0 %v158, 72
    %v1858 = vpop.permute.xlu0 %1857
    %v1859 = vsel %vm169, %v1856, 0
    %v1861 = vsel %vm169, %v1858, 0
    %1863 = vmatprep.subr.mxu0 0.0
    %1864 = vmatpush1.xpose.msra.mxu0 0.0
    %1865 = vmatprep.subr.mxu0 0.0
    %1866 = vmatpush1.xpose.msra.mxu0 0.0
    %1867 = vmatprep.subr.mxu0 0.0
    %1868 = vmatpush1.xpose.msra.mxu0 0.0
    %1869 = vmatprep.subr.mxu0 0.0
    %1870 = vmatpush1.xpose.msra.mxu0 0.0
    %1871 = vmatprep.subr.mxu0 0.0
    %1872 = vmatpush1.xpose.msra.mxu0 0.0
    %1873 = vmatprep.subr.mxu0 0.0
    %1874 = vmatpush1.xpose.msra.mxu0 0.0
    %1875 = vmatprep.subr.mxu0 0.0
    %1876 = vmatpush1.xpose.msra.mxu0 0.0
    %1877 = vmatprep.subr.mxu0 0.0
    %1878 = vmatpush1.xpose.msra.mxu0 0.0
    %1879 = vmatprep.subr.mxu0 0.0
    %1880 = vmatpush1.xpose.msra.mxu0 0.0
    %1881 = vmatprep.subr.mxu0 0.0
    %1882 = vmatpush1.xpose.msra.mxu0 0.0
    %1883 = vmatprep.subr.mxu0 0.0
    %1884 = vmatpush1.xpose.msra.mxu0 0.0
    %1885 = vmatprep.subr.mxu0 0.0
    %1886 = vmatpush1.xpose.msra.mxu0 0.0
    %1887 = vmatprep.subr.mxu0 0.0
    %1888 = vmatpush1.xpose.msra.mxu0 0.0
    %1889 = vmatprep.subr.mxu0 0.0
    %1890 = vmatpush1.xpose.msra.mxu0 0.0
    %1891 = vmatprep.subr.mxu0 0.0
    %1892 = vmatpush1.xpose.msra.mxu0 0.0
    %1893 = vmatprep.subr.mxu0 0.0
    %1894 = vmatpush1.xpose.msra.mxu0 %v1861
    %1895 = vmatprep.subr.mxu0 0.0
    %1896 = vmatpush2.xpose.msra.mxu0 0.0
    %1897 = vmatprep.subr.mxu0 0.0
    %1898 = vmatpush2.xpose.msra.mxu0 0.0
    %1899 = vmatprep.subr.mxu0 0.0
    %1900 = vmatpush2.xpose.msra.mxu0 0.0
    %1901 = vmatprep.subr.mxu0 0.0
    %1902 = vmatpush2.xpose.msra.mxu0 0.0
    %1903 = vmatprep.subr.mxu0 0.0
    %1904 = vmatpush2.xpose.msra.mxu0 0.0
    %1905 = vmatprep.subr.mxu0 0.0
    %1906 = vmatpush2.xpose.msra.mxu0 0.0
    %1907 = vmatprep.subr.mxu0 0.0
    %1908 = vmatpush2.xpose.msra.mxu0 0.0
    %1909 = vmatprep.subr.mxu0 0.0
    %1910 = vmatpush2.xpose.msra.mxu0 0.0
    %1911 = vmatprep.subr.mxu0 0.0
    %1912 = vmatpush2.xpose.msra.mxu0 0.0
    %1913 = vmatprep.subr.mxu0 0.0
    %1914 = vmatpush2.xpose.msra.mxu0 0.0
    %1915 = vmatprep.subr.mxu0 0.0
    %1916 = vmatpush2.xpose.msra.mxu0 0.0
    %1917 = vmatprep.subr.mxu0 0.0
    %1918 = vmatpush2.xpose.msra.mxu0 0.0
    %1919 = vmatprep.subr.mxu0 0.0
    %1920 = vmatpush2.xpose.msra.mxu0 0.0
    %1921 = vmatprep.subr.mxu0 0.0
    %1922 = vmatpush2.xpose.msra.mxu0 0.0
    %1923 = vmatprep.subr.mxu0 0.0
    %1924 = vmatpush2.xpose.msra.mxu0 0.0
    %1925 = vmatprep.subr.mxu0 0.0
    %1926 = vmatpush2.xpose.msra.mxu0 0.0
    %1927 = vmatprep.mubr.f32.mxu0 0.0
    %1928 = vmatmul.mubr.f32.gmra.mxu0 %v1859
    %v1929 = vpop.f32.mrf.mxu0
    %v1930 = vadd.f32 %v1140, %v1929
    %v1931 = vpop.f32.mrf.mxu0
    %1932 = vdwg.mxu0
    %v1933 = vsel %vm169, %v1930, -inf
    %1934 = vmax.xlane.f32.xlu0 %v1933
    %v1935 = vpop.xlane.xlu0 %1934
    %v1936 = vsub.f32 %v1930, %v1935
    %v1937 = vmul.f32 %v1936, 1.442695
    %v1938 = vpow.pop %v1937
    %v1939 = vsel %vm169, %v1938, 0.0
    %1940 = vadd.xlane.f32.xlu0 %v1939
    %v1941 = vpop.xlane.xlu0 %1940
    %v1942 = vrcp.pop %v1941
    %v1943 = vmul.f32 %v1938, %v1942
    %1944 = vrot.lane.b32.xlu0 %v158, 40
    %v1945 = vpop.permute.xlu0 %1944
    %v1948 = vsel %vm169, %v1943, 0
    %1950 = vmatprep.subr.mxu0 0.0
    %1951 = vmatpush1.msra.mxu0 0.0
    %1952 = vmatprep.subr.mxu0 0.0
    %1953 = vmatpush1.msra.mxu0 0.0
    %1954 = vmatprep.subr.mxu0 0.0
    %1955 = vmatpush1.msra.mxu0 0.0
    %1956 = vmatprep.subr.mxu0 0.0
    %1957 = vmatpush1.msra.mxu0 0.0
    %1958 = vmatprep.subr.mxu0 0.0
    %1959 = vmatpush1.msra.mxu0 0.0
    %1960 = vmatprep.subr.mxu0 0.0
    %1961 = vmatpush1.msra.mxu0 0.0
    %1962 = vmatprep.subr.mxu0 0.0
    %1963 = vmatpush1.msra.mxu0 0.0
    %1964 = vmatprep.subr.mxu0 0.0
    %1965 = vmatpush1.msra.mxu0 0.0
    %1966 = vmatprep.subr.mxu0 0.0
    %1967 = vmatpush1.msra.mxu0 0.0
    %1968 = vmatprep.subr.mxu0 0.0
    %1969 = vmatpush1.msra.mxu0 0.0
    %1970 = vmatprep.subr.mxu0 0.0
    %1971 = vmatpush1.msra.mxu0 0.0
    %1972 = vmatprep.subr.mxu0 0.0
    %1973 = vmatpush1.msra.mxu0 0.0
    %1974 = vmatprep.subr.mxu0 0.0
    %1975 = vmatpush1.msra.mxu0 0.0
    %1976 = vmatprep.subr.mxu0 0.0
    %1977 = vmatpush1.msra.mxu0 0.0
    %1978 = vmatprep.subr.mxu0 0.0
    %1979 = vmatpush1.msra.mxu0 0.0
    %1980 = vmatprep.subr.mxu0 0.0
    %1981 = vmatpush1.msra.mxu0 %v1945
    %1982 = vmatprep.subr.mxu0 0.0
    %1983 = vmatpush2.msra.mxu0 0.0
    %1984 = vmatprep.subr.mxu0 0.0
    %1985 = vmatpush2.msra.mxu0 0.0
    %1986 = vmatprep.subr.mxu0 0.0
    %1987 = vmatpush2.msra.mxu0 0.0
    %1988 = vmatprep.subr.mxu0 0.0
    %1989 = vmatpush2.msra.mxu0 0.0
    %1990 = vmatprep.subr.mxu0 0.0
    %1991 = vmatpush2.msra.mxu0 0.0
    %1992 = vmatprep.subr.mxu0 0.0
    %1993 = vmatpush2.msra.mxu0 0.0
    %1994 = vmatprep.subr.mxu0 0.0
    %1995 = vmatpush2.msra.mxu0 0.0
    %1996 = vmatprep.subr.mxu0 0.0
    %1997 = vmatpush2.msra.mxu0 0.0
    %1998 = vmatprep.subr.mxu0 0.0
    %1999 = vmatpush2.msra.mxu0 0.0
    %2000 = vmatprep.subr.mxu0 0.0
    %2001 = vmatpush2.msra.mxu0 0.0
    %2002 = vmatprep.subr.mxu0 0.0
    %2003 = vmatpush2.msra.mxu0 0.0
    %2004 = vmatprep.subr.mxu0 0.0
    %2005 = vmatpush2.msra.mxu0 0.0
    %2006 = vmatprep.subr.mxu0 0.0
    %2007 = vmatpush2.msra.mxu0 0.0
    %2008 = vmatprep.subr.mxu0 0.0
    %2009 = vmatpush2.msra.mxu0 0.0
    %2010 = vmatprep.subr.mxu0 0.0
    %2011 = vmatpush2.msra.mxu0 0.0
    %2012 = vmatprep.subr.mxu0 0.0
    %2013 = vmatpush2.msra.mxu0 0.0
    %2014 = vmatprep.mubr.f32.mxu0 0.0
    %2015 = vmatmul.mubr.f32.gmra.mxu0 %v1948
    %v2016 = vpop.f32.mrf.mxu0
    %v2017 = vadd.f32 0.0, %v2016
    %v2018 = vpop.f32.mrf.mxu0
    %2019 = vdwg.mxu0
    %v2021 = vsel %vm169, %v2017, 0
    %2023 = vmatprep.subr.mxu0 0.0
    %2024 = vmatpush1.msra.mxu0 0.0
    %2025 = vmatprep.subr.mxu0 0.0
    %2026 = vmatpush1.msra.mxu0 0.0
    %2027 = vmatprep.subr.mxu0 0.0
    %2028 = vmatpush1.msra.mxu0 0.0
    %2029 = vmatprep.subr.mxu0 0.0
    %2030 = vmatpush1.msra.mxu0 0.0
    %2031 = vmatprep.subr.mxu0 0.0
    %2032 = vmatpush1.msra.mxu0 0.0
    %2033 = vmatprep.subr.mxu0 0.0
    %2034 = vmatpush1.msra.mxu0 0.0
    %2035 = vmatprep.subr.mxu0 0.0
    %2036 = vmatpush1.msra.mxu0 0.0
    %2037 = vmatprep.subr.mxu0 0.0
    %2038 = vmatpush1.msra.mxu0 0.0
    %2039 = vmatprep.subr.mxu0 0.0
    %2040 = vmatpush1.msra.mxu0 0.0
    %2041 = vmatprep.subr.mxu0 0.0
    %2042 = vmatpush1.msra.mxu0 0.0
    %2043 = vmatprep.subr.mxu0 0.0
    %2044 = vmatpush1.msra.mxu0 0.0
    %2045 = vmatprep.subr.mxu0 0.0
    %2046 = vmatpush1.msra.mxu0 0.0
    %2047 = vmatprep.subr.mxu0 0.0
    %2048 = vmatpush1.msra.mxu0 0.0
    %2049 = vmatprep.subr.mxu0 0.0
    %2050 = vmatpush1.msra.mxu0 0.0
    %2051 = vmatprep.subr.mxu0 0.0
    %2052 = vmatpush1.msra.mxu0 0.0
    %2053 = vmatprep.subr.mxu0 0.0
    %2054 = vmatpush1.msra.mxu0 %v1060
    %2055 = vmatprep.subr.mxu0 0.0
    %2056 = vmatpush2.msra.mxu0 0.0
    %2057 = vmatprep.subr.mxu0 0.0
    %2058 = vmatpush2.msra.mxu0 0.0
    %2059 = vmatprep.subr.mxu0 0.0
    %2060 = vmatpush2.msra.mxu0 0.0
    %2061 = vmatprep.subr.mxu0 0.0
    %2062 = vmatpush2.msra.mxu0 0.0
    %2063 = vmatprep.subr.mxu0 0.0
    %2064 = vmatpush2.msra.mxu0 0.0
    %2065 = vmatprep.subr.mxu0 0.0
    %2066 = vmatpush2.msra.mxu0 0.0
    %2067 = vmatprep.subr.mxu0 0.0
    %2068 = vmatpush2.msra.mxu0 0.0
    %2069 = vmatprep.subr.mxu0 0.0
    %2070 = vmatpush2.msra.mxu0 0.0
    %2071 = vmatprep.subr.mxu0 0.0
    %2072 = vmatpush2.msra.mxu0 0.0
    %2073 = vmatprep.subr.mxu0 0.0
    %2074 = vmatpush2.msra.mxu0 0.0
    %2075 = vmatprep.subr.mxu0 0.0
    %2076 = vmatpush2.msra.mxu0 0.0
    %2077 = vmatprep.subr.mxu0 0.0
    %2078 = vmatpush2.msra.mxu0 0.0
    %2079 = vmatprep.subr.mxu0 0.0
    %2080 = vmatpush2.msra.mxu0 0.0
    %2081 = vmatprep.subr.mxu0 0.0
    %2082 = vmatpush2.msra.mxu0 0.0
    %2083 = vmatprep.subr.mxu0 0.0
    %2084 = vmatpush2.msra.mxu0 0.0
    %2085 = vmatprep.subr.mxu0 0.0
    %2086 = vmatpush2.msra.mxu0 0.0
    %2087 = vmatprep.mubr.f32.mxu0 0.0
    %2088 = vmatmul.mubr.f32.gmra.mxu0 %v2021
    %v2089 = vpop.f32.mrf.mxu0
    %v2090 = vadd.f32 0.0, %v2089
    %v2091 = vpop.f32.mrf.mxu0
    %2092 = vdwg.mxu0
    %v2093 = vadd.f32 %v1854, %v2090
    %v2094 = vadd.f32 %v18, %v1135
    %v2095 = vadd.f32 %v19, %v2093
    %v2096 = vlaneseq
    %v2097 = vshrl.u32 %v2096, 7
    %v2098 = vsub.s32 0, %v2097
    %v2099 = vrot.slane %v23, %v2098
    %v2100 = vadd.f32 %v2094, %v2099
    %v2101 = vadd.f32 %v2095, %v2099
    %v2102 = vsel %vm36, %v2100, 0.0
    %2103 = vadd.xlane.f32.xlu0 %v2102
    %v2104 = vpop.xlane.xlu0 %2103
    %v2105 = vsel %vm36, %v2101, 0.0
    %2106 = vadd.xlane.f32.xlu0 %v2105
    %v2107 = vpop.xlane.xlu0 %2106
    %v2108 = vmul.f32 %v2104, %v43
    %v2109 = vmul.f32 %v2107, %v43
    %v2110 = vsub.f32 %v2100, %v2108
    %v2111 = vsub.f32 %v2101, %v2109
    %v2112 = vmul.f32 %v2110, %v2110
    %v2113 = vmul.f32 %v2111, %v2111
    %v2114 = vsel %vm36, %v2112, 0.0
    %2115 = vadd.xlane.f32.xlu0 %v2114
    %v2116 = vpop.xlane.xlu0 %2115
    %v2117 = vsel %vm36, %v2113, 0.0
    %2118 = vadd.xlane.f32.xlu0 %v2117
    %v2119 = vpop.xlane.xlu0 %2118
    %v2120 = vmul.f32 %v2116, %v43
    %v2121 = vmul.f32 %v2119, %v43
    %v2122 = vadd.f32 %v2120, 1e-05
    %v2123 = vadd.f32 %v2121, 1e-05
    %v2124 = vrsqrt.pop %v2122
    %v2125 = vrsqrt.pop %v2123
    %v2126 = vmul.f32 %v2110, %v2124
    %v2127 = vmul.f32 %v2111, %v2125
    %v2128 = vlaneseq
    %v2129 = vshrl.u32 %v2128, 7
    %v2130 = vsub.s32 0, %v2129
    %v2131 = vrot.slane %v24, %v2130
    %v2132 = vmul.f32 %v2126, %v2131
    %v2133 = vmul.f32 %v2127, %v2131
    %v2134 = vlaneseq
    %v2135 = vshrl.u32 %v2134, 7
    %v2136 = vsub.s32 0, %v2135
    %v2137 = vrot.slane %v25, %v2136
    %v2138 = vadd.f32 %v2132, %v2137
    %v2139 = vadd.f32 %v2133, %v2137
    %v2140 = vlaneseq
    %v2141 = vshrl.u32 %v2140, 7
    %v2142 = vsub.s32 0, %v2141
    %v2143 = vrot.slane %v26, %v2142
    %v2145 = vsel %vm36, %v2138, 0
    %v2148 = vsel %vm36, %v2139, 0
    %2150 = vmatprep.subr.mxu0 0.0
    %2151 = vmatpush1.msra.mxu0 0.0
    %2152 = vmatprep.subr.mxu0 0.0
    %2153 = vmatpush1.msra.mxu0 0.0
    %2154 = vmatprep.subr.mxu0 0.0
    %2155 = vmatpush1.msra.mxu0 0.0
    %2156 = vmatprep.subr.mxu0 0.0
    %2157 = vmatpush1.msra.mxu0 0.0
    %2158 = vmatprep.subr.mxu0 0.0
    %2159 = vmatpush1.msra.mxu0 0.0
    %2160 = vmatprep.subr.mxu0 0.0
    %2161 = vmatpush1.msra.mxu0 0.0
    %2162 = vmatprep.subr.mxu0 0.0
    %2163 = vmatpush1.msra.mxu0 0.0
    %2164 = vmatprep.subr.mxu0 0.0
    %2165 = vmatpush1.msra.mxu0 0.0
    %2166 = vmatprep.subr.mxu0 0.0
    %2167 = vmatpush1.msra.mxu0 0.0
    %2168 = vmatprep.subr.mxu0 0.0
    %2169 = vmatpush1.msra.mxu0 0.0
    %2170 = vmatprep.subr.mxu0 0.0
    %2171 = vmatpush1.msra.mxu0 0.0
    %2172 = vmatprep.subr.mxu0 0.0
    %2173 = vmatpush1.msra.mxu0 0.0
    %2174 = vmatprep.subr.mxu0 0.0
    %2175 = vmatpush1.msra.mxu0 %v35
    %2176 = vmatprep.subr.mxu0 0.0
    %2177 = vmatpush1.msra.mxu0 %v33
    %2178 = vmatprep.subr.mxu0 0.0
    %2179 = vmatpush1.msra.mxu0 %v31
    %2180 = vmatprep.subr.mxu0 0.0
    %2181 = vmatpush1.msra.mxu0 %v29
    %2182 = vmatprep.subr.mxu0 0.0
    %2183 = vmatpush2.msra.mxu0 0.0
    %2184 = vmatprep.subr.mxu0 0.0
    %2185 = vmatpush2.msra.mxu0 0.0
    %2186 = vmatprep.subr.mxu0 0.0
    %2187 = vmatpush2.msra.mxu0 0.0
    %2188 = vmatprep.subr.mxu0 0.0
    %2189 = vmatpush2.msra.mxu0 0.0
    %2190 = vmatprep.subr.mxu0 0.0
    %2191 = vmatpush2.msra.mxu0 0.0
    %2192 = vmatprep.subr.mxu0 0.0
    %2193 = vmatpush2.msra.mxu0 0.0
    %2194 = vmatprep.subr.mxu0 0.0
    %2195 = vmatpush2.msra.mxu0 0.0
    %2196 = vmatprep.subr.mxu0 0.0
    %2197 = vmatpush2.msra.mxu0 0.0
    %2198 = vmatprep.subr.mxu0 0.0
    %2199 = vmatpush2.msra.mxu0 0.0
    %2200 = vmatprep.subr.mxu0 0.0
    %2201 = vmatpush2.msra.mxu0 0.0
    %2202 = vmatprep.subr.mxu0 0.0
    %2203 = vmatpush2.msra.mxu0 0.0
    %2204 = vmatprep.subr.mxu0 0.0
    %2205 = vmatpush2.msra.mxu0 0.0
    %2206 = vmatprep.subr.mxu0 0.0
    %2207 = vmatpush2.msra.mxu0 0.0
    %2208 = vmatprep.subr.mxu0 0.0
    %2209 = vmatpush2.msra.mxu0 0.0
    %2210 = vmatprep.subr.mxu0 0.0
    %2211 = vmatpush2.msra.mxu0 0.0
    %2212 = vmatprep.subr.mxu0 0.0
    %2213 = vmatpush2.msra.mxu0 0.0
    %2214 = vmatprep.mubr.f32.mxu0 0.0
    %2215 = vmatmul.mubr.f32.gmra.mxu0 %v2145
    %v2216 = vpop.f32.mrf.mxu0
    %v2217 = vadd.f32 %v2143, %v2216
    %v2218 = vpop.f32.mrf.mxu0
    %2219 = vmatprep.mubr.f32.mxu0 0.0
    %2220 = vmatmul.mubr.f32.gmra.mxu0 %v2148
    %v2221 = vpop.f32.mrf.mxu0
    %v2222 = vadd.f32 %v2143, %v2221
    %v2223 = vpop.f32.mrf.mxu0
    %2224 = vdwg.mxu0
    %v2225 = vmax.f32 %v2217, 0.0
    %v2226 = vmax.f32 %v2222, 0.0
    %v2227 = vld [vmem:[%s2] sm:$0xff]
    %v2228 = vld [vmem:[%s2 + $0x8] sm:$0xff]
    %v2229 = vld [vmem:[%s2 + $0x10] sm:$0xff]
    %v2230 = vld [vmem:[%s2 + $0x18] sm:$0xff]
    %v2231 = vld [vmem:[%s2 + $0x20] sm:$0xff]
    %v2232 = vld [vmem:[%s2 + $0x28] sm:$0xff]
    %v2233 = vld [vmem:[%s2 + $0x30] sm:$0xff]
    %v2234 = vld [vmem:[%s2 + $0x38] sm:$0xff]
    %v2235 = vlaneseq
    %v2236 = vshrl.u32 %v2235, 7
    %v2237 = vsub.s32 0, %v2236
    %v2238 = vrot.slane %v27, %v2237
    %vm2239 = vcmask 523264
    %v2241 = vsel %vm2239, %v2225, 0
    %v2244 = vsel %vm2239, %v2226, 0
    %2246 = vmatprep.subr.mxu0 0.0
    %2247 = vmatpush1.msra.mxu0 0.0
    %2248 = vmatprep.subr.mxu0 0.0
    %2249 = vmatpush1.msra.mxu0 0.0
    %2250 = vmatprep.subr.mxu0 0.0
    %2251 = vmatpush1.msra.mxu0 0.0
    %2252 = vmatprep.subr.mxu0 0.0
    %2253 = vmatpush1.msra.mxu0 0.0
    %2254 = vmatprep.subr.mxu0 0.0
    %2255 = vmatpush1.msra.mxu0 0.0
    %2256 = vmatprep.subr.mxu0 0.0
    %2257 = vmatpush1.msra.mxu0 0.0
    %2258 = vmatprep.subr.mxu0 0.0
    %2259 = vmatpush1.msra.mxu0 0.0
    %2260 = vmatprep.subr.mxu0 0.0
    %2261 = vmatpush1.msra.mxu0 0.0
    %2262 = vmatprep.subr.mxu0 0.0
    %2263 = vmatpush1.msra.mxu0 %v2234
    %2264 = vmatprep.subr.mxu0 0.0
    %2265 = vmatpush1.msra.mxu0 %v2233
    %2266 = vmatprep.subr.mxu0 0.0
    %2267 = vmatpush1.msra.mxu0 %v2232
    %2268 = vmatprep.subr.mxu0 0.0
    %2269 = vmatpush1.msra.mxu0 %v2231
    %2270 = vmatprep.subr.mxu0 0.0
    %2271 = vmatpush1.msra.mxu0 %v2230
    %2272 = vmatprep.subr.mxu0 0.0
    %2273 = vmatpush1.msra.mxu0 %v2229
    %2274 = vmatprep.subr.mxu0 0.0
    %2275 = vmatpush1.msra.mxu0 %v2228
    %2276 = vmatprep.subr.mxu0 0.0
    %2277 = vmatpush1.msra.mxu0 %v2227
    %2278 = vmatprep.subr.mxu0 0.0
    %2279 = vmatpush2.msra.mxu0 0.0
    %2280 = vmatprep.subr.mxu0 0.0
    %2281 = vmatpush2.msra.mxu0 0.0
    %2282 = vmatprep.subr.mxu0 0.0
    %2283 = vmatpush2.msra.mxu0 0.0
    %2284 = vmatprep.subr.mxu0 0.0
    %2285 = vmatpush2.msra.mxu0 0.0
    %2286 = vmatprep.subr.mxu0 0.0
    %2287 = vmatpush2.msra.mxu0 0.0
    %2288 = vmatprep.subr.mxu0 0.0
    %2289 = vmatpush2.msra.mxu0 0.0
    %2290 = vmatprep.subr.mxu0 0.0
    %2291 = vmatpush2.msra.mxu0 0.0
    %2292 = vmatprep.subr.mxu0 0.0
    %2293 = vmatpush2.msra.mxu0 0.0
    %2294 = vmatprep.subr.mxu0 0.0
    %2295 = vmatpush2.msra.mxu0 0.0
    %2296 = vmatprep.subr.mxu0 0.0
    %2297 = vmatpush2.msra.mxu0 0.0
    %2298 = vmatprep.subr.mxu0 0.0
    %2299 = vmatpush2.msra.mxu0 0.0
    %2300 = vmatprep.subr.mxu0 0.0
    %2301 = vmatpush2.msra.mxu0 0.0
    %2302 = vmatprep.subr.mxu0 0.0
    %2303 = vmatpush2.msra.mxu0 0.0
    %2304 = vmatprep.subr.mxu0 0.0
    %2305 = vmatpush2.msra.mxu0 0.0
    %2306 = vmatprep.subr.mxu0 0.0
    %2307 = vmatpush2.msra.mxu0 0.0
    %2308 = vmatprep.subr.mxu0 0.0
    %2309 = vmatpush2.msra.mxu0 0.0
    %2310 = vmatprep.mubr.f32.mxu0 0.0
    %2311 = vmatmul.mubr.f32.gmra.mxu0 %v2241
    %v2312 = vpop.f32.mrf.mxu0
    %v2313 = vadd.f32 %v2238, %v2312
    %v2314 = vpop.f32.mrf.mxu0
    %2315 = vmatprep.mubr.f32.mxu0 0.0
    %2316 = vmatmul.mubr.f32.gmra.mxu0 %v2244
    %v2317 = vpop.f32.mrf.mxu0
    %v2318 = vadd.f32 %v2238, %v2317
    %v2319 = vpop.f32.mrf.mxu0
    %2320 = vdwg.mxu0
    %v2321 = vadd.f32 %v2100, %v2313
    %v2322 = vadd.f32 %v2101, %v2318
    %2323 = vst.msk [vmem:[#allocation2] sm:$0xff] %vm36, %v2321
    %2324 = vst.msk [vmem:[#allocation2 + $0x8] sm:$0xff] %vm36, %v2322
    // Predicated region
    $region18: #{tpu_custom_call.1} parent=1 // pred_check
      _
    $region19: #{tpu_custom_call.1} parent=1 // pred_check_branch
      %2326 = sbr.rel (0) target = $region21
    $region20: #{tpu_custom_call.1} parent=1 // pred_region
      %s2328 = ssub.s32 256, 256
      %2329 = vsyncadd [#allocation3], %s2328
      %s2330 = sshll.u32 [#allocation2], 4
      %s2331 = int_to_ptr.vmem [resolvable:$true] %s2330
      %2336 = dma.vmem_to_hbm [thread:$0]  %s2331, 256, %s4, [#allocation3], 128, 128, 8
    $region21: #{tpu_custom_call.1} parent=1 // pred_fallthru
      _
    // Predicated region
    $region22: #{tpu_custom_call.1} parent=1 // pred_check
      _
    $region23: #{tpu_custom_call.1} parent=1 // pred_check_branch
      %2338 = sbr.rel (0) target = $region25
    $region24: #{tpu_custom_call.1} parent=1 // pred_region
      %2339 = dma.done [#allocation3], 256
    $region25: #{tpu_custom_call.1} parent=1 // pred_fallthru
      _
    %2340 = vsyncpa [#allocation3], 1

</llo_original>
